<compile_context>
chip_gen: v5e
topology: v5e:2x2
jax: 0.10.0
libtpu: 0.0.40
codegen_flags: <defaults>
</compile_context>

<pallas_src>
import functools
import math

import jax
import jax.numpy as jnp
from jax import lax
from jax.experimental import pallas as pl
from jax.experimental.pallas import tpu as pltpu


# --------------------------- Fused forward kernel -------------------------- #

def _fused_mha_kernel(x_ref, y_ref, wq_ref, bq_ref, wkv_ref, bkv_ref,
                      wo_ref, bo_ref, cosq_ref, sinq_ref, cosk_ref, sink_ref,
                      o_ref, *, num_heads, head_dim, scale):
    H, HD = num_heads, head_dim
    HD2 = HD // 2
    E = H * HD
    dn = (((1,), (1,)), ((), ()))            # contract last axes (no k.T)

    x = x_ref[0]                             # (Lq, E) f32
    y = y_ref[0]                             # (Lk, E) f32
    Lq = x.shape[0]

    # ---- projections (f32, matches nn.Linear precision of the module) ----
    q = jnp.dot(x, wq_ref[...], preferred_element_type=jnp.float32) + bq_ref[...]
    kv = jnp.dot(y, wkv_ref[...], preferred_element_type=jnp.float32) + bkv_ref[...]
    q = q * scale                            # fold softmax scale into q once
    k = kv[:, :E]
    v = kv[:, E:]

    cos_q = cosq_ref[...]                    # (Lq, HD2)
    sin_q = sinq_ref[...]
    cos_k = cosk_ref[...]                    # (Lk, HD2)
    sin_k = sink_ref[...]

    wo = wo_ref[...]                         # (E, E)

    acc = jnp.zeros((Lq, E), jnp.float32)
    for h in range(H):                       # static unroll over heads
        s0 = h * HD
        qa = q[:, s0:s0 + HD2]
        qb = q[:, s0 + HD2:s0 + HD]
        ka = k[:, s0:s0 + HD2]
        kb = k[:, s0 + HD2:s0 + HD]

        # rotary: channels are pre-de-interleaved (Wq/Wk columns permuted in
        # the wrapper) so this is pure contiguous-slice VPU math.
        qra = qa * cos_q - qb * sin_q
        qrb = qa * sin_q + qb * cos_q
        kra = ka * cos_k - kb * sin_k
        krb = ka * sin_k + kb * cos_k

        # QK^T on the MXU in bf16 with f32 accumulation (emulates .half()).
        s = lax.dot_general(qra.astype(jnp.bfloat16), kra.astype(jnp.bfloat16),
                            dn, preferred_element_type=jnp.float32)
        s = s + lax.dot_general(qrb.astype(jnp.bfloat16), krb.astype(jnp.bfloat16),
                                dn, preferred_element_type=jnp.float32)

        # f32 max-subtracted softmax over the full Lk block.
        m = jnp.max(s, axis=-1, keepdims=True)
        p = jnp.exp(s - m)
        l = jnp.sum(p, axis=-1, keepdims=True)

        # PV matmul in bf16; normalize with approx reciprocal (EUP slot).
        vh = v[:, s0:s0 + HD].astype(jnp.bfloat16)
        pv = jnp.dot(p.astype(jnp.bfloat16), vh, preferred_element_type=jnp.float32)
        o_h = pv * pl.reciprocal(l, approx=True)

        # Emulate fp16 attention output, then cast to out-projection dtype.
        o_h = o_h.astype(jnp.bfloat16).astype(jnp.float32)

        # This head's contribution to the output projection: (Lq,HD)@(HD,E).
        acc = acc + jnp.dot(o_h, wo[s0:s0 + HD, :],
                            preferred_element_type=jnp.float32)

    o_ref[0] = (acc + bo_ref[...]).astype(o_ref.dtype)


def fused_rotary_cross_attention(x, y, wq, bq, wkv, bkv, wo, bo,
                                 cos_q, sin_q, cos_k, sin_k,
                                 *, num_heads, head_dim):
    """x: (B, Lq, E), y: (B, Lk, E); weights already permuted/fused."""
    B, Lq, E = x.shape
    _, Lk, _ = y.shape
    HD2 = head_dim // 2
    scale = 1.0 / math.sqrt(head_dim)
    kernel = functools.partial(_fused_mha_kernel, num_heads=num_heads,
                               head_dim=head_dim, scale=scale)
    return pl.pallas_call(
        kernel,
        out_shape=jax.ShapeDtypeStruct((B, Lq, E), jnp.float32),
        grid=(B,),
        in_specs=[
            pl.BlockSpec((1, Lq, E), lambda b: (b, 0, 0)),      # x
            pl.BlockSpec((1, Lk, E), lambda b: (b, 0, 0)),      # y
            pl.BlockSpec((E, E), lambda b: (0, 0)),             # Wq (permuted)
            pl.BlockSpec((1, E), lambda b: (0, 0)),             # bq (permuted)
            pl.BlockSpec((E, 2 * E), lambda b: (0, 0)),         # Wk|Wv fused
            pl.BlockSpec((1, 2 * E), lambda b: (0, 0)),         # bk|bv fused
            pl.BlockSpec((E, E), lambda b: (0, 0)),             # Wo
            pl.BlockSpec((1, E), lambda b: (0, 0)),             # bo
            pl.BlockSpec((Lq, HD2), lambda b: (0, 0)),          # cos_q
            pl.BlockSpec((Lq, HD2), lambda b: (0, 0)),          # sin_q
            pl.BlockSpec((Lk, HD2), lambda b: (0, 0)),          # cos_k
            pl.BlockSpec((Lk, HD2), lambda b: (0, 0)),          # sin_k
        ],
        out_specs=pl.BlockSpec((1, Lq, E), lambda b: (b, 0, 0)),
        compiler_params=pltpu.CompilerParams(
            dimension_semantics=("parallel",)),
    )(x, y, wq, bq.reshape(1, E), wkv, bkv.reshape(1, 2 * E),
      wo, bo.reshape(1, E), cos_q, sin_q, cos_k, sin_k)


# ------------------------------- Module port ------------------------------- #

class RotaryMHFlashCrossAttentionPallas:
    def __init__(self, num_heads=4, embed_dim=32, dropout=0.1,
                 causal=False, window_size=-1, key=jax.random.PRNGKey(0)):
        assert embed_dim % num_heads == 0
        self.num_heads = num_heads
        self.embed_dim = embed_dim
        self.head_dim = embed_dim // num_heads
        self.causal = causal
        self.window_size = window_size

        ks = jax.random.split(key, 8)
        s = 0.02
        E = embed_dim
        self.Wq = jax.random.normal(ks[0], (E, E), jnp.float32) * s
        self.bq = jax.random.normal(ks[1], (E,), jnp.float32) * s
        self.Wk = jax.random.normal(ks[2], (E, E), jnp.float32) * s
        self.bk = jax.random.normal(ks[3], (E,), jnp.float32) * s
        self.Wv = jax.random.normal(ks[4], (E, E), jnp.float32) * s
        self.bv = jax.random.normal(ks[5], (E,), jnp.float32) * s
        self.Wo = jax.random.normal(ks[6], (E, E), jnp.float32) * s
        self.bo = jax.random.normal(ks[7], (E,), jnp.float32) * s

        # De-interleave rotary pairs per head: within each head put the even
        # channels first, then the odd channels.  Applying the SAME column
        # permutation to Wq and Wk leaves q.k (per head) unchanged, but turns
        # the interleaved-pair rotary into contiguous-half arithmetic inside
        # the kernel (no stride-2 gathers / lane shuffles).
        HD, H = self.head_dim, self.num_heads
        perm = []
        for h in range(H):
            base = h * HD
            perm += [base + 2 * j for j in range(HD // 2)]
            perm += [base + 2 * j + 1 for j in range(HD // 2)]
        perm = jnp.asarray(perm, jnp.int32)
        Wq_p, bq_p = self.Wq[:, perm], self.bq[perm]
        Wk_p, bk_p = self.Wk[:, perm], self.bk[perm]
        self.Wq_p, self.bq_p = Wq_p, bq_p
        # Fuse K|V projections into one matmul.
        self.Wkv = jnp.concatenate([Wk_p, self.Wv], axis=1)    # (E, 2E)
        self.bkv = jnp.concatenate([bk_p, self.bv], axis=0)    # (2E,)

    def __call__(self, x, y, rotary_freqs):
        """x: (B, Lq, E), y: (B, Lk, E), rotary_freqs: (Lmax, head_dim // 2)."""
        B, Lq, E = x.shape
        _, Lk, _ = y.shape
        cos_q = jnp.cos(rotary_freqs[:Lq]).astype(jnp.float32)
        sin_q = jnp.sin(rotary_freqs[:Lq]).astype(jnp.float32)
        cos_k = jnp.cos(rotary_freqs[:Lk]).astype(jnp.float32)
        sin_k = jnp.sin(rotary_freqs[:Lk]).astype(jnp.float32)
        return fused_rotary_cross_attention(
            x, y, self.Wq_p, self.bq_p, self.Wkv, self.bkv, self.Wo, self.bo,
            cos_q, sin_q, cos_k, sin_k,
            num_heads=self.num_heads, head_dim=self.head_dim)


# ---------------------------------- Main ----------------------------------- #

if __name__ == "__main__":
    key = jax.random.PRNGKey(0)
    kx, ky, kp = jax.random.split(key, 3)

    B, Lq, Lk = 2, 8, 16
    num_heads, embed_dim = 4, 32
    head_dim = embed_dim // num_heads

    x = jax.random.normal(kx, (B, Lq, embed_dim), jnp.float32)
    y = jax.random.normal(ky, (B, Lk, embed_dim), jnp.float32)

    # Rotary angle table: pos * inv_freq, shape (max(Lq, Lk), head_dim // 2).
    inv_freq = 1.0 / (10000.0 ** (jnp.arange(0, head_dim, 2, dtype=jnp.float32)
                                  / head_dim))
    pos = jnp.arange(max(Lq, Lk), dtype=jnp.float32)
    rotary_freqs = pos[:, None] * inv_freq[None, :]

    mod = RotaryMHFlashCrossAttentionPallas(num_heads=num_heads,
                                            embed_dim=embed_dim, key=kp)
    out = mod(x, y, rotary_freqs)
    out = jax.block_until_ready(out)

    assert out.shape == (B, Lq, embed_dim) and out.dtype == jnp.float32
    assert bool(jnp.all(jnp.isfinite(out)))
    print("KERNEL_OK")
</pallas_src>

<mosaic_0001>
module attributes {stable_mosaic.version = 11 : i64} {
  func.func @_fused_mha_kernel(%arg0: i32, %arg1: memref<1x8x32xf32, #tpu.memory_space<vmem>>, %arg2: memref<1x16x32xf32, #tpu.memory_space<vmem>>, %arg3: memref<32x32xf32, #tpu.memory_space<vmem>>, %arg4: memref<1x32xf32, #tpu.memory_space<vmem>>, %arg5: memref<32x64xf32, #tpu.memory_space<vmem>>, %arg6: memref<1x64xf32, #tpu.memory_space<vmem>>, %arg7: memref<32x32xf32, #tpu.memory_space<vmem>>, %arg8: memref<1x32xf32, #tpu.memory_space<vmem>>, %arg9: memref<8x4xf32, #tpu.memory_space<vmem>>, %arg10: memref<8x4xf32, #tpu.memory_space<vmem>>, %arg11: memref<16x4xf32, #tpu.memory_space<vmem>>, %arg12: memref<16x4xf32, #tpu.memory_space<vmem>>, %arg13: memref<1x8x32xf32, #tpu.memory_space<vmem>>) attributes {dimension_semantics = [#tpu.dimension_semantics<parallel>], iteration_bounds = array<i64: 2>, scalar_prefetch = 0 : i64, scratch_operands = 0 : i64, tpu.core_type = #tpu.core_type<tc>, window_params = [{transform_indices = @transform_0, window_bounds = array<i64: 1, 8, 32>}, {transform_indices = @transform_1, window_bounds = array<i64: 1, 16, 32>}, {pipeline_mode = #tpu.pipeline_mode<synchronous>, transform_indices = @transform_2, window_bounds = array<i64: 32, 32>}, {pipeline_mode = #tpu.pipeline_mode<synchronous>, transform_indices = @transform_3, window_bounds = array<i64: 1, 32>}, {pipeline_mode = #tpu.pipeline_mode<synchronous>, transform_indices = @transform_4, window_bounds = array<i64: 32, 64>}, {pipeline_mode = #tpu.pipeline_mode<synchronous>, transform_indices = @transform_5, window_bounds = array<i64: 1, 64>}, {pipeline_mode = #tpu.pipeline_mode<synchronous>, transform_indices = @transform_6, window_bounds = array<i64: 32, 32>}, {pipeline_mode = #tpu.pipeline_mode<synchronous>, transform_indices = @transform_7, window_bounds = array<i64: 1, 32>}, {pipeline_mode = #tpu.pipeline_mode<synchronous>, transform_indices = @transform_8, window_bounds = array<i64: 8, 4>}, {pipeline_mode = #tpu.pipeline_mode<synchronous>, transform_indices = @transform_9, window_bounds = array<i64: 8, 4>}, {pipeline_mode = #tpu.pipeline_mode<synchronous>, transform_indices = @transform_10, window_bounds = array<i64: 16, 4>}, {pipeline_mode = #tpu.pipeline_mode<synchronous>, transform_indices = @transform_11, window_bounds = array<i64: 16, 4>}, {transform_indices = @transform_12, window_bounds = array<i64: 1, 8, 32>}]} {
    %c0 = arith.constant 0 : index
    %c0_0 = arith.constant 0 : index
    %c0_1 = arith.constant 0 : index
    %0 = vector.load %arg1[%c0, %c0_0, %c0_1] : memref<1x8x32xf32, #tpu.memory_space<vmem>>, vector<1x8x32xf32>
    %1 = vector.shape_cast %0 : vector<1x8x32xf32> to vector<8x32xf32>
    %c0_2 = arith.constant 0 : index
    %c0_3 = arith.constant 0 : index
    %c0_4 = arith.constant 0 : index
    %2 = vector.load %arg2[%c0_2, %c0_3, %c0_4] : memref<1x16x32xf32, #tpu.memory_space<vmem>>, vector<1x16x32xf32>
    %3 = vector.shape_cast %2 : vector<1x16x32xf32> to vector<16x32xf32>
    %c0_5 = arith.constant 0 : index
    %c0_6 = arith.constant 0 : index
    %4 = vector.load %arg3[%c0_5, %c0_6] : memref<32x32xf32, #tpu.memory_space<vmem>>, vector<32x32xf32>
    %cst = arith.constant dense<0.000000e+00> : vector<8x32xf32>
    %5 = tpu.matmul %1, %4, %cst {dimension_numbers = #tpu.dot_dimension_numbers<[1], [0], [0], [1], [0, 0, 1, 1], [], []>} : vector<8x32xf32>, vector<32x32xf32>, vector<8x32xf32> -> vector<8x32xf32>
    %c0_7 = arith.constant 0 : index
    %c0_8 = arith.constant 0 : index
    %6 = vector.load %arg4[%c0_7, %c0_8] : memref<1x32xf32, #tpu.memory_space<vmem>>, vector<1x32xf32>
    %7 = vector.broadcast %6 : vector<1x32xf32> to vector<8x32xf32>
    %8 = arith.addf %5, %7 : vector<8x32xf32>
    %c0_9 = arith.constant 0 : index
    %c0_10 = arith.constant 0 : index
    %9 = vector.load %arg5[%c0_9, %c0_10] : memref<32x64xf32, #tpu.memory_space<vmem>>, vector<32x64xf32>
    %cst_11 = arith.constant dense<0.000000e+00> : vector<16x64xf32>
    %10 = tpu.matmul %3, %9, %cst_11 {dimension_numbers = #tpu.dot_dimension_numbers<[1], [0], [0], [1], [0, 0, 1, 1], [], []>} : vector<16x32xf32>, vector<32x64xf32>, vector<16x64xf32> -> vector<16x64xf32>
    %c0_12 = arith.constant 0 : index
    %c0_13 = arith.constant 0 : index
    %11 = vector.load %arg6[%c0_12, %c0_13] : memref<1x64xf32, #tpu.memory_space<vmem>>, vector<1x64xf32>
    %12 = vector.broadcast %11 : vector<1x64xf32> to vector<16x64xf32>
    %13 = arith.addf %10, %12 : vector<16x64xf32>
    %cst_14 = arith.constant 0.353553385 : f32
    %14 = vector.broadcast %cst_14 : f32 to vector<8x32xf32>
    %15 = arith.mulf %8, %14 : vector<8x32xf32>
    %16 = vector.extract_strided_slice %13 {offsets = [0, 0], sizes = [16, 32], strides = [1, 1]} : vector<16x64xf32> to vector<16x32xf32>
    %17 = vector.extract_strided_slice %13 {offsets = [0, 32], sizes = [16, 32], strides = [1, 1]} : vector<16x64xf32> to vector<16x32xf32>
    %c0_15 = arith.constant 0 : index
    %c0_16 = arith.constant 0 : index
    %18 = vector.load %arg9[%c0_15, %c0_16] : memref<8x4xf32, #tpu.memory_space<vmem>>, vector<8x4xf32>
    %c0_17 = arith.constant 0 : index
    %c0_18 = arith.constant 0 : index
    %19 = vector.load %arg10[%c0_17, %c0_18] : memref<8x4xf32, #tpu.memory_space<vmem>>, vector<8x4xf32>
    %c0_19 = arith.constant 0 : index
    %c0_20 = arith.constant 0 : index
    %20 = vector.load %arg11[%c0_19, %c0_20] : memref<16x4xf32, #tpu.memory_space<vmem>>, vector<16x4xf32>
    %c0_21 = arith.constant 0 : index
    %c0_22 = arith.constant 0 : index
    %21 = vector.load %arg12[%c0_21, %c0_22] : memref<16x4xf32, #tpu.memory_space<vmem>>, vector<16x4xf32>
    %c0_23 = arith.constant 0 : index
    %c0_24 = arith.constant 0 : index
    %22 = vector.load %arg7[%c0_23, %c0_24] : memref<32x32xf32, #tpu.memory_space<vmem>>, vector<32x32xf32>
    %cst_25 = arith.constant 0.000000e+00 : f32
    %23 = vector.broadcast %cst_25 : f32 to vector<8x32xf32>
    %24 = vector.extract_strided_slice %15 {offsets = [0, 0], sizes = [8, 4], strides = [1, 1]} : vector<8x32xf32> to vector<8x4xf32>
    %25 = vector.extract_strided_slice %15 {offsets = [0, 4], sizes = [8, 4], strides = [1, 1]} : vector<8x32xf32> to vector<8x4xf32>
    %26 = vector.extract_strided_slice %16 {offsets = [0, 0], sizes = [16, 4], strides = [1, 1]} : vector<16x32xf32> to vector<16x4xf32>
    %27 = vector.extract_strided_slice %16 {offsets = [0, 4], sizes = [16, 4], strides = [1, 1]} : vector<16x32xf32> to vector<16x4xf32>
    %28 = arith.mulf %24, %18 : vector<8x4xf32>
    %29 = arith.mulf %25, %19 : vector<8x4xf32>
    %30 = arith.subf %28, %29 : vector<8x4xf32>
    %31 = arith.mulf %24, %19 : vector<8x4xf32>
    %32 = arith.mulf %25, %18 : vector<8x4xf32>
    %33 = arith.addf %31, %32 : vector<8x4xf32>
    %34 = arith.mulf %26, %20 : vector<16x4xf32>
    %35 = arith.mulf %27, %21 : vector<16x4xf32>
    %36 = arith.subf %34, %35 : vector<16x4xf32>
    %37 = arith.mulf %26, %21 : vector<16x4xf32>
    %38 = arith.mulf %27, %20 : vector<16x4xf32>
    %39 = arith.addf %37, %38 : vector<16x4xf32>
    %40 = arith.truncf %30 : vector<8x4xf32> to vector<8x4xbf16>
    %41 = arith.truncf %36 : vector<16x4xf32> to vector<16x4xbf16>
    %cst_26 = arith.constant dense<0.000000e+00> : vector<8x16xf32>
    %42 = tpu.matmul %40, %41, %cst_26 {dimension_numbers = #tpu.dot_dimension_numbers<[1], [1], [0], [0], [0, 0, 1, 0], [], []>} : vector<8x4xbf16>, vector<16x4xbf16>, vector<8x16xf32> -> vector<8x16xf32>
    %43 = arith.truncf %33 : vector<8x4xf32> to vector<8x4xbf16>
    %44 = arith.truncf %39 : vector<16x4xf32> to vector<16x4xbf16>
    %cst_27 = arith.constant dense<0.000000e+00> : vector<8x16xf32>
    %45 = tpu.matmul %43, %44, %cst_27 {dimension_numbers = #tpu.dot_dimension_numbers<[1], [1], [0], [0], [0, 0, 1, 0], [], []>} : vector<8x4xbf16>, vector<16x4xbf16>, vector<8x16xf32> -> vector<8x16xf32>
    %46 = arith.addf %42, %45 : vector<8x16xf32>
    %cst_28 = arith.constant dense<0xFF800000> : vector<8xf32>
    %47 = vector.multi_reduction <maximumf>, %46, %cst_28 [1] : vector<8x16xf32> to vector<8xf32>
    %48 = vector.shape_cast %47 : vector<8xf32> to vector<8x1xf32>
    %49 = vector.broadcast %48 : vector<8x1xf32> to vector<8x16xf32>
    %50 = arith.subf %46, %49 : vector<8x16xf32>
    %51 = math.exp %50 : vector<8x16xf32>
    %cst_29 = arith.constant dense<0.000000e+00> : vector<8xf32>
    %52 = vector.multi_reduction <add>, %51, %cst_29 [1] : vector<8x16xf32> to vector<8xf32>
    %53 = vector.shape_cast %52 : vector<8xf32> to vector<8x1xf32>
    %54 = vector.extract_strided_slice %17 {offsets = [0, 0], sizes = [16, 8], strides = [1, 1]} : vector<16x32xf32> to vector<16x8xf32>
    %55 = arith.truncf %54 : vector<16x8xf32> to vector<16x8xbf16>
    %56 = arith.truncf %51 : vector<8x16xf32> to vector<8x16xbf16>
    %cst_30 = arith.constant dense<0.000000e+00> : vector<8x8xf32>
    %57 = tpu.matmul %56, %55, %cst_30 {dimension_numbers = #tpu.dot_dimension_numbers<[1], [0], [0], [1], [0, 0, 1, 1], [], []>} : vector<8x16xbf16>, vector<16x8xbf16>, vector<8x8xf32> -> vector<8x8xf32>
    %58 = tpu.reciprocal %53 {approx = true} : vector<8x1xf32> -> vector<8x1xf32>
    %59 = vector.broadcast %58 : vector<8x1xf32> to vector<8x8xf32>
    %60 = arith.mulf %57, %59 : vector<8x8xf32>
    %61 = arith.truncf %60 : vector<8x8xf32> to vector<8x8xbf16>
    %62 = arith.extf %61 : vector<8x8xbf16> to vector<8x8xf32>
    %63 = vector.extract_strided_slice %22 {offsets = [0, 0], sizes = [8, 32], strides = [1, 1]} : vector<32x32xf32> to vector<8x32xf32>
    %cst_31 = arith.constant dense<0.000000e+00> : vector<8x32xf32>
    %64 = tpu.matmul %62, %63, %cst_31 {dimension_numbers = #tpu.dot_dimension_numbers<[1], [0], [0], [1], [0, 0, 1, 1], [], []>} : vector<8x8xf32>, vector<8x32xf32>, vector<8x32xf32> -> vector<8x32xf32>
    %65 = arith.addf %23, %64 : vector<8x32xf32>
    %66 = vector.extract_strided_slice %15 {offsets = [0, 8], sizes = [8, 4], strides = [1, 1]} : vector<8x32xf32> to vector<8x4xf32>
    %67 = vector.extract_strided_slice %15 {offsets = [0, 12], sizes = [8, 4], strides = [1, 1]} : vector<8x32xf32> to vector<8x4xf32>
    %68 = vector.extract_strided_slice %16 {offsets = [0, 8], sizes = [16, 4], strides = [1, 1]} : vector<16x32xf32> to vector<16x4xf32>
    %69 = vector.extract_strided_slice %16 {offsets = [0, 12], sizes = [16, 4], strides = [1, 1]} : vector<16x32xf32> to vector<16x4xf32>
    %70 = arith.mulf %66, %18 : vector<8x4xf32>
    %71 = arith.mulf %67, %19 : vector<8x4xf32>
    %72 = arith.subf %70, %71 : vector<8x4xf32>
    %73 = arith.mulf %66, %19 : vector<8x4xf32>
    %74 = arith.mulf %67, %18 : vector<8x4xf32>
    %75 = arith.addf %73, %74 : vector<8x4xf32>
    %76 = arith.mulf %68, %20 : vector<16x4xf32>
    %77 = arith.mulf %69, %21 : vector<16x4xf32>
    %78 = arith.subf %76, %77 : vector<16x4xf32>
    %79 = arith.mulf %68, %21 : vector<16x4xf32>
    %80 = arith.mulf %69, %20 : vector<16x4xf32>
    %81 = arith.addf %79, %80 : vector<16x4xf32>
    %82 = arith.truncf %72 : vector<8x4xf32> to vector<8x4xbf16>
    %83 = arith.truncf %78 : vector<16x4xf32> to vector<16x4xbf16>
    %cst_32 = arith.constant dense<0.000000e+00> : vector<8x16xf32>
    %84 = tpu.matmul %82, %83, %cst_32 {dimension_numbers = #tpu.dot_dimension_numbers<[1], [1], [0], [0], [0, 0, 1, 0], [], []>} : vector<8x4xbf16>, vector<16x4xbf16>, vector<8x16xf32> -> vector<8x16xf32>
    %85 = arith.truncf %75 : vector<8x4xf32> to vector<8x4xbf16>
    %86 = arith.truncf %81 : vector<16x4xf32> to vector<16x4xbf16>
    %cst_33 = arith.constant dense<0.000000e+00> : vector<8x16xf32>
    %87 = tpu.matmul %85, %86, %cst_33 {dimension_numbers = #tpu.dot_dimension_numbers<[1], [1], [0], [0], [0, 0, 1, 0], [], []>} : vector<8x4xbf16>, vector<16x4xbf16>, vector<8x16xf32> -> vector<8x16xf32>
    %88 = arith.addf %84, %87 : vector<8x16xf32>
    %cst_34 = arith.constant dense<0xFF800000> : vector<8xf32>
    %89 = vector.multi_reduction <maximumf>, %88, %cst_34 [1] : vector<8x16xf32> to vector<8xf32>
    %90 = vector.shape_cast %89 : vector<8xf32> to vector<8x1xf32>
    %91 = vector.broadcast %90 : vector<8x1xf32> to vector<8x16xf32>
    %92 = arith.subf %88, %91 : vector<8x16xf32>
    %93 = math.exp %92 : vector<8x16xf32>
    %cst_35 = arith.constant dense<0.000000e+00> : vector<8xf32>
    %94 = vector.multi_reduction <add>, %93, %cst_35 [1] : vector<8x16xf32> to vector<8xf32>
    %95 = vector.shape_cast %94 : vector<8xf32> to vector<8x1xf32>
    %96 = vector.extract_strided_slice %17 {offsets = [0, 8], sizes = [16, 8], strides = [1, 1]} : vector<16x32xf32> to vector<16x8xf32>
    %97 = arith.truncf %96 : vector<16x8xf32> to vector<16x8xbf16>
    %98 = arith.truncf %93 : vector<8x16xf32> to vector<8x16xbf16>
    %cst_36 = arith.constant dense<0.000000e+00> : vector<8x8xf32>
    %99 = tpu.matmul %98, %97, %cst_36 {dimension_numbers = #tpu.dot_dimension_numbers<[1], [0], [0], [1], [0, 0, 1, 1], [], []>} : vector<8x16xbf16>, vector<16x8xbf16>, vector<8x8xf32> -> vector<8x8xf32>
    %100 = tpu.reciprocal %95 {approx = true} : vector<8x1xf32> -> vector<8x1xf32>
    %101 = vector.broadcast %100 : vector<8x1xf32> to vector<8x8xf32>
    %102 = arith.mulf %99, %101 : vector<8x8xf32>
    %103 = arith.truncf %102 : vector<8x8xf32> to vector<8x8xbf16>
    %104 = arith.extf %103 : vector<8x8xbf16> to vector<8x8xf32>
    %105 = vector.extract_strided_slice %22 {offsets = [8, 0], sizes = [8, 32], strides = [1, 1]} : vector<32x32xf32> to vector<8x32xf32>
    %cst_37 = arith.constant dense<0.000000e+00> : vector<8x32xf32>
    %106 = tpu.matmul %104, %105, %cst_37 {dimension_numbers = #tpu.dot_dimension_numbers<[1], [0], [0], [1], [0, 0, 1, 1], [], []>} : vector<8x8xf32>, vector<8x32xf32>, vector<8x32xf32> -> vector<8x32xf32>
    %107 = arith.addf %65, %106 : vector<8x32xf32>
    %108 = vector.extract_strided_slice %15 {offsets = [0, 16], sizes = [8, 4], strides = [1, 1]} : vector<8x32xf32> to vector<8x4xf32>
    %109 = vector.extract_strided_slice %15 {offsets = [0, 20], sizes = [8, 4], strides = [1, 1]} : vector<8x32xf32> to vector<8x4xf32>
    %110 = vector.extract_strided_slice %16 {offsets = [0, 16], sizes = [16, 4], strides = [1, 1]} : vector<16x32xf32> to vector<16x4xf32>
    %111 = vector.extract_strided_slice %16 {offsets = [0, 20], sizes = [16, 4], strides = [1, 1]} : vector<16x32xf32> to vector<16x4xf32>
    %112 = arith.mulf %108, %18 : vector<8x4xf32>
    %113 = arith.mulf %109, %19 : vector<8x4xf32>
    %114 = arith.subf %112, %113 : vector<8x4xf32>
    %115 = arith.mulf %108, %19 : vector<8x4xf32>
    %116 = arith.mulf %109, %18 : vector<8x4xf32>
    %117 = arith.addf %115, %116 : vector<8x4xf32>
    %118 = arith.mulf %110, %20 : vector<16x4xf32>
    %119 = arith.mulf %111, %21 : vector<16x4xf32>
    %120 = arith.subf %118, %119 : vector<16x4xf32>
    %121 = arith.mulf %110, %21 : vector<16x4xf32>
    %122 = arith.mulf %111, %20 : vector<16x4xf32>
    %123 = arith.addf %121, %122 : vector<16x4xf32>
    %124 = arith.truncf %114 : vector<8x4xf32> to vector<8x4xbf16>
    %125 = arith.truncf %120 : vector<16x4xf32> to vector<16x4xbf16>
    %cst_38 = arith.constant dense<0.000000e+00> : vector<8x16xf32>
    %126 = tpu.matmul %124, %125, %cst_38 {dimension_numbers = #tpu.dot_dimension_numbers<[1], [1], [0], [0], [0, 0, 1, 0], [], []>} : vector<8x4xbf16>, vector<16x4xbf16>, vector<8x16xf32> -> vector<8x16xf32>
    %127 = arith.truncf %117 : vector<8x4xf32> to vector<8x4xbf16>
    %128 = arith.truncf %123 : vector<16x4xf32> to vector<16x4xbf16>
    %cst_39 = arith.constant dense<0.000000e+00> : vector<8x16xf32>
    %129 = tpu.matmul %127, %128, %cst_39 {dimension_numbers = #tpu.dot_dimension_numbers<[1], [1], [0], [0], [0, 0, 1, 0], [], []>} : vector<8x4xbf16>, vector<16x4xbf16>, vector<8x16xf32> -> vector<8x16xf32>
    %130 = arith.addf %126, %129 : vector<8x16xf32>
    %cst_40 = arith.constant dense<0xFF800000> : vector<8xf32>
    %131 = vector.multi_reduction <maximumf>, %130, %cst_40 [1] : vector<8x16xf32> to vector<8xf32>
    %132 = vector.shape_cast %131 : vector<8xf32> to vector<8x1xf32>
    %133 = vector.broadcast %132 : vector<8x1xf32> to vector<8x16xf32>
    %134 = arith.subf %130, %133 : vector<8x16xf32>
    %135 = math.exp %134 : vector<8x16xf32>
    %cst_41 = arith.constant dense<0.000000e+00> : vector<8xf32>
    %136 = vector.multi_reduction <add>, %135, %cst_41 [1] : vector<8x16xf32> to vector<8xf32>
    %137 = vector.shape_cast %136 : vector<8xf32> to vector<8x1xf32>
    %138 = vector.extract_strided_slice %17 {offsets = [0, 16], sizes = [16, 8], strides = [1, 1]} : vector<16x32xf32> to vector<16x8xf32>
    %139 = arith.truncf %138 : vector<16x8xf32> to vector<16x8xbf16>
    %140 = arith.truncf %135 : vector<8x16xf32> to vector<8x16xbf16>
    %cst_42 = arith.constant dense<0.000000e+00> : vector<8x8xf32>
    %141 = tpu.matmul %140, %139, %cst_42 {dimension_numbers = #tpu.dot_dimension_numbers<[1], [0], [0], [1], [0, 0, 1, 1], [], []>} : vector<8x16xbf16>, vector<16x8xbf16>, vector<8x8xf32> -> vector<8x8xf32>
    %142 = tpu.reciprocal %137 {approx = true} : vector<8x1xf32> -> vector<8x1xf32>
    %143 = vector.broadcast %142 : vector<8x1xf32> to vector<8x8xf32>
    %144 = arith.mulf %141, %143 : vector<8x8xf32>
    %145 = arith.truncf %144 : vector<8x8xf32> to vector<8x8xbf16>
    %146 = arith.extf %145 : vector<8x8xbf16> to vector<8x8xf32>
    %147 = vector.extract_strided_slice %22 {offsets = [16, 0], sizes = [8, 32], strides = [1, 1]} : vector<32x32xf32> to vector<8x32xf32>
    %cst_43 = arith.constant dense<0.000000e+00> : vector<8x32xf32>
    %148 = tpu.matmul %146, %147, %cst_43 {dimension_numbers = #tpu.dot_dimension_numbers<[1], [0], [0], [1], [0, 0, 1, 1], [], []>} : vector<8x8xf32>, vector<8x32xf32>, vector<8x32xf32> -> vector<8x32xf32>
    %149 = arith.addf %107, %148 : vector<8x32xf32>
    %150 = vector.extract_strided_slice %15 {offsets = [0, 24], sizes = [8, 4], strides = [1, 1]} : vector<8x32xf32> to vector<8x4xf32>
    %151 = vector.extract_strided_slice %15 {offsets = [0, 28], sizes = [8, 4], strides = [1, 1]} : vector<8x32xf32> to vector<8x4xf32>
    %152 = vector.extract_strided_slice %16 {offsets = [0, 24], sizes = [16, 4], strides = [1, 1]} : vector<16x32xf32> to vector<16x4xf32>
    %153 = vector.extract_strided_slice %16 {offsets = [0, 28], sizes = [16, 4], strides = [1, 1]} : vector<16x32xf32> to vector<16x4xf32>
    %154 = arith.mulf %150, %18 : vector<8x4xf32>
    %155 = arith.mulf %151, %19 : vector<8x4xf32>
    %156 = arith.subf %154, %155 : vector<8x4xf32>
    %157 = arith.mulf %150, %19 : vector<8x4xf32>
    %158 = arith.mulf %151, %18 : vector<8x4xf32>
    %159 = arith.addf %157, %158 : vector<8x4xf32>
    %160 = arith.mulf %152, %20 : vector<16x4xf32>
    %161 = arith.mulf %153, %21 : vector<16x4xf32>
    %162 = arith.subf %160, %161 : vector<16x4xf32>
    %163 = arith.mulf %152, %21 : vector<16x4xf32>
    %164 = arith.mulf %153, %20 : vector<16x4xf32>
    %165 = arith.addf %163, %164 : vector<16x4xf32>
    %166 = arith.truncf %156 : vector<8x4xf32> to vector<8x4xbf16>
    %167 = arith.truncf %162 : vector<16x4xf32> to vector<16x4xbf16>
    %cst_44 = arith.constant dense<0.000000e+00> : vector<8x16xf32>
    %168 = tpu.matmul %166, %167, %cst_44 {dimension_numbers = #tpu.dot_dimension_numbers<[1], [1], [0], [0], [0, 0, 1, 0], [], []>} : vector<8x4xbf16>, vector<16x4xbf16>, vector<8x16xf32> -> vector<8x16xf32>
    %169 = arith.truncf %159 : vector<8x4xf32> to vector<8x4xbf16>
    %170 = arith.truncf %165 : vector<16x4xf32> to vector<16x4xbf16>
    %cst_45 = arith.constant dense<0.000000e+00> : vector<8x16xf32>
    %171 = tpu.matmul %169, %170, %cst_45 {dimension_numbers = #tpu.dot_dimension_numbers<[1], [1], [0], [0], [0, 0, 1, 0], [], []>} : vector<8x4xbf16>, vector<16x4xbf16>, vector<8x16xf32> -> vector<8x16xf32>
    %172 = arith.addf %168, %171 : vector<8x16xf32>
    %cst_46 = arith.constant dense<0xFF800000> : vector<8xf32>
    %173 = vector.multi_reduction <maximumf>, %172, %cst_46 [1] : vector<8x16xf32> to vector<8xf32>
    %174 = vector.shape_cast %173 : vector<8xf32> to vector<8x1xf32>
    %175 = vector.broadcast %174 : vector<8x1xf32> to vector<8x16xf32>
    %176 = arith.subf %172, %175 : vector<8x16xf32>
    %177 = math.exp %176 : vector<8x16xf32>
    %cst_47 = arith.constant dense<0.000000e+00> : vector<8xf32>
    %178 = vector.multi_reduction <add>, %177, %cst_47 [1] : vector<8x16xf32> to vector<8xf32>
    %179 = vector.shape_cast %178 : vector<8xf32> to vector<8x1xf32>
    %180 = vector.extract_strided_slice %17 {offsets = [0, 24], sizes = [16, 8], strides = [1, 1]} : vector<16x32xf32> to vector<16x8xf32>
    %181 = arith.truncf %180 : vector<16x8xf32> to vector<16x8xbf16>
    %182 = arith.truncf %177 : vector<8x16xf32> to vector<8x16xbf16>
    %cst_48 = arith.constant dense<0.000000e+00> : vector<8x8xf32>
    %183 = tpu.matmul %182, %181, %cst_48 {dimension_numbers = #tpu.dot_dimension_numbers<[1], [0], [0], [1], [0, 0, 1, 1], [], []>} : vector<8x16xbf16>, vector<16x8xbf16>, vector<8x8xf32> -> vector<8x8xf32>
    %184 = tpu.reciprocal %179 {approx = true} : vector<8x1xf32> -> vector<8x1xf32>
    %185 = vector.broadcast %184 : vector<8x1xf32> to vector<8x8xf32>
    %186 = arith.mulf %183, %185 : vector<8x8xf32>
    %187 = arith.truncf %186 : vector<8x8xf32> to vector<8x8xbf16>
    %188 = arith.extf %187 : vector<8x8xbf16> to vector<8x8xf32>
    %189 = vector.extract_strided_slice %22 {offsets = [24, 0], sizes = [8, 32], strides = [1, 1]} : vector<32x32xf32> to vector<8x32xf32>
    %cst_49 = arith.constant dense<0.000000e+00> : vector<8x32xf32>
    %190 = tpu.matmul %188, %189, %cst_49 {dimension_numbers = #tpu.dot_dimension_numbers<[1], [0], [0], [1], [0, 0, 1, 1], [], []>} : vector<8x8xf32>, vector<8x32xf32>, vector<8x32xf32> -> vector<8x32xf32>
    %191 = arith.addf %149, %190 : vector<8x32xf32>
    %c0_50 = arith.constant 0 : index
    %c0_51 = arith.constant 0 : index
    %192 = vector.load %arg8[%c0_50, %c0_51] : memref<1x32xf32, #tpu.memory_space<vmem>>, vector<1x32xf32>
    %193 = vector.broadcast %192 : vector<1x32xf32> to vector<8x32xf32>
    %194 = arith.addf %191, %193 : vector<8x32xf32>
    %c0_52 = arith.constant 0 : index
    %c0_53 = arith.constant 0 : index
    %c0_54 = arith.constant 0 : index
    %195 = vector.load %arg13[%c0_52, %c0_53, %c0_54] : memref<1x8x32xf32, #tpu.memory_space<vmem>>, vector<1x8x32xf32>
    %196 = vector.shape_cast %195 : vector<1x8x32xf32> to vector<8x32xf32>
    %197 = vector.shape_cast %194 : vector<8x32xf32> to vector<1x8x32xf32>
    tpu.vector_store %arg13[%c0_52, %c0_53, %c0_54], %197 {strides = array<i32>} : memref<1x8x32xf32, #tpu.memory_space<vmem>>, vector<1x8x32xf32>,
    return
  }
  func.func @transform_0(%arg0: i32) -> (i32, i32, i32) {
    %c0_i32 = arith.constant 0 : i32
    %c0_i32_0 = arith.constant 0 : i32
    %c0_i32_1 = arith.constant 0 : i32
    return %arg0, %c0_i32, %c0_i32_0 : i32, i32, i32
  }
  func.func @transform_1(%arg0: i32) -> (i32, i32, i32) {
    %c0_i32 = arith.constant 0 : i32
    %c0_i32_0 = arith.constant 0 : i32
    %c0_i32_1 = arith.constant 0 : i32
    return %arg0, %c0_i32, %c0_i32_0 : i32, i32, i32
  }
  func.func @transform_2(%arg0: i32) -> (i32, i32) {
    %c0_i32 = arith.constant 0 : i32
    %c0_i32_0 = arith.constant 0 : i32
    %c0_i32_1 = arith.constant 0 : i32
    return %c0_i32, %c0_i32_0 : i32, i32
  }
  func.func @transform_3(%arg0: i32) -> (i32, i32) {
    %c0_i32 = arith.constant 0 : i32
    %c0_i32_0 = arith.constant 0 : i32
    %c0_i32_1 = arith.constant 0 : i32
    return %c0_i32, %c0_i32_0 : i32, i32
  }
  func.func @transform_4(%arg0: i32) -> (i32, i32) {
    %c0_i32 = arith.constant 0 : i32
    %c0_i32_0 = arith.constant 0 : i32
    %c0_i32_1 = arith.constant 0 : i32
    return %c0_i32, %c0_i32_0 : i32, i32
  }
  func.func @transform_5(%arg0: i32) -> (i32, i32) {
    %c0_i32 = arith.constant 0 : i32
    %c0_i32_0 = arith.constant 0 : i32
    %c0_i32_1 = arith.constant 0 : i32
    return %c0_i32, %c0_i32_0 : i32, i32
  }
  func.func @transform_6(%arg0: i32) -> (i32, i32) {
    %c0_i32 = arith.constant 0 : i32
    %c0_i32_0 = arith.constant 0 : i32
    %c0_i32_1 = arith.constant 0 : i32
    return %c0_i32, %c0_i32_0 : i32, i32
  }
  func.func @transform_7(%arg0: i32) -> (i32, i32) {
    %c0_i32 = arith.constant 0 : i32
    %c0_i32_0 = arith.constant 0 : i32
    %c0_i32_1 = arith.constant 0 : i32
    return %c0_i32, %c0_i32_0 : i32, i32
  }
  func.func @transform_8(%arg0: i32) -> (i32, i32) {
    %c0_i32 = arith.constant 0 : i32
    %c0_i32_0 = arith.constant 0 : i32
    %c0_i32_1 = arith.constant 0 : i32
    return %c0_i32, %c0_i32_0 : i32, i32
  }
  func.func @transform_9(%arg0: i32) -> (i32, i32) {
    %c0_i32 = arith.constant 0 : i32
    %c0_i32_0 = arith.constant 0 : i32
    %c0_i32_1 = arith.constant 0 : i32
    return %c0_i32, %c0_i32_0 : i32, i32
  }
  func.func @transform_10(%arg0: i32) -> (i32, i32) {
    %c0_i32 = arith.constant 0 : i32
    %c0_i32_0 = arith.constant 0 : i32
    %c0_i32_1 = arith.constant 0 : i32
    return %c0_i32, %c0_i32_0 : i32, i32
  }
  func.func @transform_11(%arg0: i32) -> (i32, i32) {
    %c0_i32 = arith.constant 0 : i32
    %c0_i32_0 = arith.constant 0 : i32
    %c0_i32_1 = arith.constant 0 : i32
    return %c0_i32, %c0_i32_0 : i32, i32
  }
  func.func @transform_12(%arg0: i32) -> (i32, i32, i32) {
    %c0_i32 = arith.constant 0 : i32
    %c0_i32_0 = arith.constant 0 : i32
    %c0_i32_1 = arith.constant 0 : i32
    return %arg0, %c0_i32, %c0_i32_0 : i32, i32, i32
  }
}

</mosaic_0001>

<llo_original>
// kernel: tpu_custom_call.1
$region0: #{tpu_custom_call.1}
  #allocation0 [shape = 'u32[]', space=smem, size = 0x4, offset = 0x4, fixed_abs, tag = 'smem constant byte address 0x4 - core index']
  #allocation1 [shape = 'u32[72,128]{1,0:T(1,128)}', space=vmem, size = 0x9000, scoped, tag = 'internal scratch']
  %s0 = inlined_call_operand.vmem [shape: f32[2,8,32], index: 0, kind: input, shape index: {}]
  %s1 = inlined_call_operand.vmem [shape: f32[2,16,32], index: 1, kind: input, shape index: {}]
  %s2 = inlined_call_operand.hbm [shape: f32[32,32], index: 2, kind: input, shape index: {}]
  %s3 = inlined_call_operand.vmem [shape: f32[1,32], index: 3, kind: input, shape index: {}]
  %s4 = inlined_call_operand.hbm [shape: f32[32,64], index: 4, kind: input, shape index: {}]
  %s5 = inlined_call_operand.vmem [shape: f32[1,64], index: 5, kind: input, shape index: {}]
  %s6 = inlined_call_operand.hbm [shape: f32[32,32], index: 6, kind: input, shape index: {}]
  %s7 = inlined_call_operand.vmem [shape: f32[1,32], index: 7, kind: input, shape index: {}]
  %s8 = inlined_call_operand.vmem [shape: f32[8,4], index: 8, kind: input, shape index: {}]
  %s9 = inlined_call_operand.vmem [shape: f32[8,4], index: 9, kind: input, shape index: {}]
  %s10 = inlined_call_operand.vmem [shape: f32[16,4], index: 10, kind: input, shape index: {}]
  %s11 = inlined_call_operand.vmem [shape: f32[16,4], index: 11, kind: input, shape index: {}]
  %s12 = inlined_call_operand.hbm [shape: f32[2,8,32], index: 12, kind: output, shape index: {}]
  %s13 = sld [smem:[#allocation0]]
  $region93: #{tpu_custom_call.1} parent=0
    _
  %s15 = ssub.s32 1, %s13
  %s16 = scalar_select 0, %s15, %s13
  $region1: #{tpu_custom_call.1} parent=0
    #allocation2 [shape = 'u8[16384]{0}', space=vmem, size = 0x4000, scoped, tag = 'input window, operand 2, single buffered']
    #allocation3 [shape = 's32[2]{0}', space=sflag, size = 0x8, scoped, tag = 'scoped memory for tpu_custom_call.1']
    #allocation4 [shape = 's32[2]{0}', space=sflag, size = 0x8, scoped, tag = 'scoped memory for tpu_custom_call.1']
    #allocation5 [shape = 'u8[16384]{0}', space=vmem, size = 0x4000, scoped, tag = 'input window, operand 4, single buffered']
    #allocation6 [shape = 's32[1]{0}', space=sflag, size = 0x4, scoped, tag = 'scoped memory for tpu_custom_call.1']
    #allocation7 [shape = 'u8[16384]{0}', space=vmem, size = 0x4000, scoped, tag = 'input window, operand 6, single buffered']
    #allocation8 [shape = 'u8[8192]{0}', space=vmem, size = 0x2000, scoped, tag = 'output window, operand 0']
    %17 = vsyncpa [#allocation3], 0
    %18 = vsyncpa [#allocation6], 0
    %19 = vsyncpa [#allocation4], 0
    %s20 = scalar_lea.sflag [#allocation4], 1
    %21 = vsyncpa %s20, 0
    loop: start=0, step=1, limit=4
    $region2: #{tpu_custom_call.1} parent=1 // loop_pre_header
      _
    $region3: #{tpu_custom_call.1} parent=1 // loop_header
      %s23 = sphi 0, %s27
      %p24 = scmp.ge.s32.totalorder %s23, 4
      %s33 = sphi 0, %s35
      %s36 = sphi 0, %s33
      %s37 = sphi 0, %s36
      %s53 = sphi 0, %s37
      %s59 = sphi 0, %s61
      %s62 = sphi 0, %s59
      %s63 = sphi 0, %s62
      %s79 = sphi 0, %s63
      %s83 = sphi 0, %s83
      %s85 = sphi 0, %s83
      %s86 = sphi 0, %s85
      %s100 = sphi 0, %s86
      %s104 = sphi 0, %s104
      %s106 = sphi 0, %s104
      %s107 = sphi 0, %s106
      %s121 = sphi 0, %s107
      %s125 = sphi 0, %s125
      %s127 = sphi 0, %s125
      %s128 = sphi 0, %s127
      %s142 = sphi 0, %s128
      %s146 = sphi 0, %s146
      %s148 = sphi 0, %s146
      %s149 = sphi 0, %s148
      %s163 = sphi 0, %s149
      %s167 = sphi 0, %s167
      %s169 = sphi 0, %s167
      %s170 = sphi 0, %s169
      %s184 = sphi 0, %s170
      %s188 = sphi 0, %s188
      %s190 = sphi 0, %s188
      %s191 = sphi 0, %s190
      %s205 = sphi 0, %s191
      %s209 = sphi 0, %s209
      %s211 = sphi 0, %s209
      %s212 = sphi 0, %s211
      %s226 = sphi 0, %s212
      %s230 = sphi 0, %s230
      %s232 = sphi 0, %s230
      %s233 = sphi 0, %s232
      %s247 = sphi 0, %s233
      %s251 = sphi 0, %s251
      %s253 = sphi 0, %s251
      %s254 = sphi 0, %s253
      %s268 = sphi 0, %s254
      %s272 = sphi 0, %s272
      %s274 = sphi 0, %s272
      %s275 = sphi 0, %s274
      %s289 = sphi 0, %s275
      %s295 = sphi 0, %s297
      %s298 = sphi 0, %s295
      %s299 = sphi 0, %s298
      %s315 = sphi 0, %s299
    $region4: #{tpu_custom_call.1} parent=1 // loop_header_branch
      %26 = sbr.rel (%p24) target = $region8
    $region5: #{tpu_custom_call.1} parent=1 // loop_body
      %s28 = ssub.s32 %s23, 1
      %s29 = ssub.s32 %s23, 2
      %s30 = sadd.s32 %s23, 1
      %s31 = ssub.s32 %s23, %s30
      %p32 = scmp.eq.s32.totalorder %s31, 0
      %s34 = sadd.s32 %s33, 1
      %s35 = scalar_select %p32, %s33, %s34
      %p38 = pneg %p32
      %p39 = scmp.eq.s32.totalorder %s23, 1
      %p40 = por %p38, %p39
      %p41 = scmp.ne.s32.totalorder %s33, %s36
      %p42 = scmp.eq.s32.totalorder %s23, 0
      %p43 = por %p41, %p42
      %p44 = scmp.ne.s32.totalorder %s33, %s36
      %p45 = scmp.eq.s32.totalorder %s28, 1
      %p46 = por %p44, %p45
      %p47 = scmp.ne.s32.totalorder %s36, %s37
      %p48 = scmp.eq.s32.totalorder %s28, 0
      %p49 = por %p47, %p48
      %p50 = scmp.ne.s32.totalorder %s36, %s37
      %p51 = scmp.eq.s32.totalorder %s29, 1
      %p52 = por %p50, %p51
      %p54 = scmp.ne.s32.totalorder %s37, %s53
      %p55 = scmp.eq.s32.totalorder %s29, 0
      %p56 = por %p54, %p55
      %s57 = ssub.s32 %s23, %s30
      %p58 = scmp.eq.s32.totalorder %s57, 0
      %s60 = sadd.s32 %s59, 1
      %s61 = scalar_select %p58, %s59, %s60
      %p64 = pneg %p58
      %p65 = scmp.eq.s32.totalorder %s23, 1
      %p66 = por %p64, %p65
      %p67 = scmp.ne.s32.totalorder %s59, %s62
      %p68 = scmp.eq.s32.totalorder %s23, 0
      %p69 = por %p67, %p68
      %p70 = scmp.ne.s32.totalorder %s59, %s62
      %p71 = scmp.eq.s32.totalorder %s28, 1
      %p72 = por %p70, %p71
      %p73 = scmp.ne.s32.totalorder %s62, %s63
      %p74 = scmp.eq.s32.totalorder %s28, 0
      %p75 = por %p73, %p74
      %p76 = scmp.ne.s32.totalorder %s62, %s63
      %p77 = scmp.eq.s32.totalorder %s29, 1
      %p78 = por %p76, %p77
      %p80 = scmp.ne.s32.totalorder %s63, %s79
      %p81 = scmp.eq.s32.totalorder %s29, 0
      %p82 = por %p80, %p81
      %s84 = sadd.s32 %s83, 1
      %p87 = scmp.eq.s32.totalorder %s23, 1
      %p88 = scmp.ne.s32.totalorder %s83, %s85
      %p89 = scmp.eq.s32.totalorder %s23, 0
      %p90 = por %p88, %p89
      %p91 = scmp.ne.s32.totalorder %s83, %s85
      %p92 = scmp.eq.s32.totalorder %s28, 1
      %p93 = por %p91, %p92
      %p94 = scmp.ne.s32.totalorder %s85, %s86
      %p95 = scmp.eq.s32.totalorder %s28, 0
      %p96 = por %p94, %p95
      %p97 = scmp.ne.s32.totalorder %s85, %s86
      %p98 = scmp.eq.s32.totalorder %s29, 1
      %p99 = por %p97, %p98
      %p101 = scmp.ne.s32.totalorder %s86, %s100
      %p102 = scmp.eq.s32.totalorder %s29, 0
      %p103 = por %p101, %p102
      %s105 = sadd.s32 %s104, 1
      %p108 = scmp.eq.s32.totalorder %s23, 1
      %p109 = scmp.ne.s32.totalorder %s104, %s106
      %p110 = scmp.eq.s32.totalorder %s23, 0
      %p111 = por %p109, %p110
      %p112 = scmp.ne.s32.totalorder %s104, %s106
      %p113 = scmp.eq.s32.totalorder %s28, 1
      %p114 = por %p112, %p113
      %p115 = scmp.ne.s32.totalorder %s106, %s107
      %p116 = scmp.eq.s32.totalorder %s28, 0
      %p117 = por %p115, %p116
      %p118 = scmp.ne.s32.totalorder %s106, %s107
      %p119 = scmp.eq.s32.totalorder %s29, 1
      %p120 = por %p118, %p119
      %p122 = scmp.ne.s32.totalorder %s107, %s121
      %p123 = scmp.eq.s32.totalorder %s29, 0
      %p124 = por %p122, %p123
      %s126 = sadd.s32 %s125, 1
      %p129 = scmp.eq.s32.totalorder %s23, 1
      %p130 = scmp.ne.s32.totalorder %s125, %s127
      %p131 = scmp.eq.s32.totalorder %s23, 0
      %p132 = por %p130, %p131
      %p133 = scmp.ne.s32.totalorder %s125, %s127
      %p134 = scmp.eq.s32.totalorder %s28, 1
      %p135 = por %p133, %p134
      %p136 = scmp.ne.s32.totalorder %s127, %s128
      %p137 = scmp.eq.s32.totalorder %s28, 0
      %p138 = por %p136, %p137
      %p139 = scmp.ne.s32.totalorder %s127, %s128
      %p140 = scmp.eq.s32.totalorder %s29, 1
      %p141 = por %p139, %p140
      %p143 = scmp.ne.s32.totalorder %s128, %s142
      %p144 = scmp.eq.s32.totalorder %s29, 0
      %p145 = por %p143, %p144
      %s147 = sadd.s32 %s146, 1
      %p150 = scmp.eq.s32.totalorder %s23, 1
      %p151 = scmp.ne.s32.totalorder %s146, %s148
      %p152 = scmp.eq.s32.totalorder %s23, 0
      %p153 = por %p151, %p152
      %p154 = scmp.ne.s32.totalorder %s146, %s148
      %p155 = scmp.eq.s32.totalorder %s28, 1
      %p156 = por %p154, %p155
      %p157 = scmp.ne.s32.totalorder %s148, %s149
      %p158 = scmp.eq.s32.totalorder %s28, 0
      %p159 = por %p157, %p158
      %p160 = scmp.ne.s32.totalorder %s148, %s149
      %p161 = scmp.eq.s32.totalorder %s29, 1
      %p162 = por %p160, %p161
      %p164 = scmp.ne.s32.totalorder %s149, %s163
      %p165 = scmp.eq.s32.totalorder %s29, 0
      %p166 = por %p164, %p165
      %s168 = sadd.s32 %s167, 1
      %p171 = scmp.eq.s32.totalorder %s23, 1
      %p172 = scmp.ne.s32.totalorder %s167, %s169
      %p173 = scmp.eq.s32.totalorder %s23, 0
      %p174 = por %p172, %p173
      %p175 = scmp.ne.s32.totalorder %s167, %s169
      %p176 = scmp.eq.s32.totalorder %s28, 1
      %p177 = por %p175, %p176
      %p178 = scmp.ne.s32.totalorder %s169, %s170
      %p179 = scmp.eq.s32.totalorder %s28, 0
      %p180 = por %p178, %p179
      %p181 = scmp.ne.s32.totalorder %s169, %s170
      %p182 = scmp.eq.s32.totalorder %s29, 1
      %p183 = por %p181, %p182
      %p185 = scmp.ne.s32.totalorder %s170, %s184
      %p186 = scmp.eq.s32.totalorder %s29, 0
      %p187 = por %p185, %p186
      %s189 = sadd.s32 %s188, 1
      %p192 = scmp.eq.s32.totalorder %s23, 1
      %p193 = scmp.ne.s32.totalorder %s188, %s190
      %p194 = scmp.eq.s32.totalorder %s23, 0
      %p195 = por %p193, %p194
      %p196 = scmp.ne.s32.totalorder %s188, %s190
      %p197 = scmp.eq.s32.totalorder %s28, 1
      %p198 = por %p196, %p197
      %p199 = scmp.ne.s32.totalorder %s190, %s191
      %p200 = scmp.eq.s32.totalorder %s28, 0
      %p201 = por %p199, %p200
      %p202 = scmp.ne.s32.totalorder %s190, %s191
      %p203 = scmp.eq.s32.totalorder %s29, 1
      %p204 = por %p202, %p203
      %p206 = scmp.ne.s32.totalorder %s191, %s205
      %p207 = scmp.eq.s32.totalorder %s29, 0
      %p208 = por %p206, %p207
      %s210 = sadd.s32 %s209, 1
      %p213 = scmp.eq.s32.totalorder %s23, 1
      %p214 = scmp.ne.s32.totalorder %s209, %s211
      %p215 = scmp.eq.s32.totalorder %s23, 0
      %p216 = por %p214, %p215
      %p217 = scmp.ne.s32.totalorder %s209, %s211
      %p218 = scmp.eq.s32.totalorder %s28, 1
      %p219 = por %p217, %p218
      %p220 = scmp.ne.s32.totalorder %s211, %s212
      %p221 = scmp.eq.s32.totalorder %s28, 0
      %p222 = por %p220, %p221
      %p223 = scmp.ne.s32.totalorder %s211, %s212
      %p224 = scmp.eq.s32.totalorder %s29, 1
      %p225 = por %p223, %p224
      %p227 = scmp.ne.s32.totalorder %s212, %s226
      %p228 = scmp.eq.s32.totalorder %s29, 0
      %p229 = por %p227, %p228
      %s231 = sadd.s32 %s230, 1
      %p234 = scmp.eq.s32.totalorder %s23, 1
      %p235 = scmp.ne.s32.totalorder %s230, %s232
      %p236 = scmp.eq.s32.totalorder %s23, 0
      %p237 = por %p235, %p236
      %p238 = scmp.ne.s32.totalorder %s230, %s232
      %p239 = scmp.eq.s32.totalorder %s28, 1
      %p240 = por %p238, %p239
      %p241 = scmp.ne.s32.totalorder %s232, %s233
      %p242 = scmp.eq.s32.totalorder %s28, 0
      %p243 = por %p241, %p242
      %p244 = scmp.ne.s32.totalorder %s232, %s233
      %p245 = scmp.eq.s32.totalorder %s29, 1
      %p246 = por %p244, %p245
      %p248 = scmp.ne.s32.totalorder %s233, %s247
      %p249 = scmp.eq.s32.totalorder %s29, 0
      %p250 = por %p248, %p249
      %s252 = sadd.s32 %s251, 1
      %p255 = scmp.eq.s32.totalorder %s23, 1
      %p256 = scmp.ne.s32.totalorder %s251, %s253
      %p257 = scmp.eq.s32.totalorder %s23, 0
      %p258 = por %p256, %p257
      %p259 = scmp.ne.s32.totalorder %s251, %s253
      %p260 = scmp.eq.s32.totalorder %s28, 1
      %p261 = por %p259, %p260
      %p262 = scmp.ne.s32.totalorder %s253, %s254
      %p263 = scmp.eq.s32.totalorder %s28, 0
      %p264 = por %p262, %p263
      %p265 = scmp.ne.s32.totalorder %s253, %s254
      %p266 = scmp.eq.s32.totalorder %s29, 1
      %p267 = por %p265, %p266
      %p269 = scmp.ne.s32.totalorder %s254, %s268
      %p270 = scmp.eq.s32.totalorder %s29, 0
      %p271 = por %p269, %p270
      %s273 = sadd.s32 %s272, 1
      %p276 = scmp.eq.s32.totalorder %s23, 1
      %p277 = scmp.ne.s32.totalorder %s272, %s274
      %p278 = scmp.eq.s32.totalorder %s23, 0
      %p279 = por %p277, %p278
      %p280 = scmp.ne.s32.totalorder %s272, %s274
      %p281 = scmp.eq.s32.totalorder %s28, 1
      %p282 = por %p280, %p281
      %p283 = scmp.ne.s32.totalorder %s274, %s275
      %p284 = scmp.eq.s32.totalorder %s28, 0
      %p285 = por %p283, %p284
      %p286 = scmp.ne.s32.totalorder %s274, %s275
      %p287 = scmp.eq.s32.totalorder %s29, 1
      %p288 = por %p286, %p287
      %p290 = scmp.ne.s32.totalorder %s275, %s289
      %p291 = scmp.eq.s32.totalorder %s29, 0
      %p292 = por %p290, %p291
      %s293 = ssub.s32 %s23, %s30
      %p294 = scmp.eq.s32.totalorder %s293, 0
      %s296 = sadd.s32 %s295, 1
      %s297 = scalar_select %p294, %s295, %s296
      %p300 = pneg %p294
      %p301 = scmp.eq.s32.totalorder %s23, 1
      %p302 = por %p300, %p301
      %p303 = scmp.ne.s32.totalorder %s295, %s298
      %p304 = scmp.eq.s32.totalorder %s23, 0
      %p305 = por %p303, %p304
      %p306 = scmp.ne.s32.totalorder %s295, %s298
      %p307 = scmp.eq.s32.totalorder %s28, 1
      %p308 = por %p306, %p307
      %p309 = scmp.ne.s32.totalorder %s298, %s299
      %p310 = scmp.eq.s32.totalorder %s28, 0
      %p311 = por %p309, %p310
      %p312 = scmp.ne.s32.totalorder %s298, %s299
      %p313 = scmp.eq.s32.totalorder %s29, 1
      %p314 = por %p312, %p313
      %p316 = scmp.ne.s32.totalorder %s299, %s315
      %p317 = scmp.eq.s32.totalorder %s29, 0
      %p318 = por %p316, %p317
      %p319 = scmp.le.s32.totalorder 1, %s23
      %p320 = scmp.lt.s32.totalorder %s23, 3
      %p321 = pnand %p319, %p320
      %p322 = pneg %p321
      // Predicated region
      $region9: #{tpu_custom_call.1} parent=5 // pred_check
        _
      $region10: #{tpu_custom_call.1} parent=5 // pred_check_branch
        %324 = sbr.rel (%p321) target = $region12
      $region11: #{tpu_custom_call.1} parent=5 // pred_region
        %s325 = ssub.s32 %s23, 1
        // Predicated region
        $region13: #{tpu_custom_call.1} parent=11 // pred_check
          %p326 = pneg %p96
        $region14: #{tpu_custom_call.1} parent=11 // pred_check_branch
          %328 = sbr.rel (%p326) target = $region16
        $region15: #{tpu_custom_call.1} parent=11 // pred_region
          %330 = vsyncadd [#allocation3], 0
          %s331 = sshll.u32 %s2, 4
          %s332 = int_to_ptr.hbm [resolvable:$true] %s331
          %s333 = sshll.u32 [#allocation2], 4
          %s334 = int_to_ptr.vmem [resolvable:$true] %s333
          %339 = dma.hbm_to_vmem [thread:$0]  %s332, 512, %s334, [#allocation3], 128, 128, 8
        $region16: #{tpu_custom_call.1} parent=11 // pred_fallthru
          _
        // Predicated region
        $region17: #{tpu_custom_call.1} parent=11 // pred_check
          %p340 = pneg %p117
        $region18: #{tpu_custom_call.1} parent=11 // pred_check_branch
          %342 = sbr.rel (%p340) target = $region20
        $region19: #{tpu_custom_call.1} parent=11 // pred_region
          _
        $region20: #{tpu_custom_call.1} parent=11 // pred_fallthru
          _
        // Predicated region
        $region21: #{tpu_custom_call.1} parent=11 // pred_check
          %p343 = pneg %p138
        $region22: #{tpu_custom_call.1} parent=11 // pred_check_branch
          %345 = sbr.rel (%p343) target = $region24
        $region23: #{tpu_custom_call.1} parent=11 // pred_region
          %347 = vsyncadd [#allocation6], 0
          %s348 = sshll.u32 %s4, 4
          %s349 = int_to_ptr.hbm [resolvable:$true] %s348
          %s350 = sshll.u32 [#allocation5], 4
          %s351 = int_to_ptr.vmem [resolvable:$true] %s350
          %356 = dma.hbm_to_vmem [thread:$0]  %s349, 512, %s351, [#allocation6], 128, 128, 8
        $region24: #{tpu_custom_call.1} parent=11 // pred_fallthru
          _
        // Predicated region
        $region25: #{tpu_custom_call.1} parent=11 // pred_check
          %p357 = pneg %p159
        $region26: #{tpu_custom_call.1} parent=11 // pred_check_branch
          %359 = sbr.rel (%p357) target = $region28
        $region27: #{tpu_custom_call.1} parent=11 // pred_region
          _
        $region28: #{tpu_custom_call.1} parent=11 // pred_fallthru
          _
        // Predicated region
        $region29: #{tpu_custom_call.1} parent=11 // pred_check
          %p360 = pneg %p180
        $region30: #{tpu_custom_call.1} parent=11 // pred_check_branch
          %362 = sbr.rel (%p360) target = $region32
        $region31: #{tpu_custom_call.1} parent=11 // pred_region
          %364 = vsyncadd [#allocation6], 0
          %s365 = sshll.u32 %s6, 4
          %s366 = int_to_ptr.hbm [resolvable:$true] %s365
          %s367 = sshll.u32 [#allocation7], 4
          %s368 = int_to_ptr.vmem [resolvable:$true] %s367
          %373 = dma.hbm_to_vmem [thread:$0]  %s366, 512, %s368, [#allocation6], 128, 128, 8
        $region32: #{tpu_custom_call.1} parent=11 // pred_fallthru
          _
        // Predicated region
        $region33: #{tpu_custom_call.1} parent=11 // pred_check
          %p374 = pneg %p201
        $region34: #{tpu_custom_call.1} parent=11 // pred_check_branch
          %376 = sbr.rel (%p374) target = $region36
        $region35: #{tpu_custom_call.1} parent=11 // pred_region
          _
        $region36: #{tpu_custom_call.1} parent=11 // pred_fallthru
          _
        // Predicated region
        $region37: #{tpu_custom_call.1} parent=11 // pred_check
          %p377 = pneg %p222
        $region38: #{tpu_custom_call.1} parent=11 // pred_check_branch
          %379 = sbr.rel (%p377) target = $region40
        $region39: #{tpu_custom_call.1} parent=11 // pred_region
          _
        $region40: #{tpu_custom_call.1} parent=11 // pred_fallthru
          _
        // Predicated region
        $region41: #{tpu_custom_call.1} parent=11 // pred_check
          %p380 = pneg %p243
        $region42: #{tpu_custom_call.1} parent=11 // pred_check_branch
          %382 = sbr.rel (%p380) target = $region44
        $region43: #{tpu_custom_call.1} parent=11 // pred_region
          _
        $region44: #{tpu_custom_call.1} parent=11 // pred_fallthru
          _
        // Predicated region
        $region45: #{tpu_custom_call.1} parent=11 // pred_check
          %p383 = pneg %p264
        $region46: #{tpu_custom_call.1} parent=11 // pred_check_branch
          %385 = sbr.rel (%p383) target = $region48
        $region47: #{tpu_custom_call.1} parent=11 // pred_region
          _
        $region48: #{tpu_custom_call.1} parent=11 // pred_fallthru
          _
        // Predicated region
        $region49: #{tpu_custom_call.1} parent=11 // pred_check
          %p386 = pneg %p285
        $region50: #{tpu_custom_call.1} parent=11 // pred_check_branch
          %388 = sbr.rel (%p386) target = $region52
        $region51: #{tpu_custom_call.1} parent=11 // pred_region
          _
        $region52: #{tpu_custom_call.1} parent=11 // pred_fallthru
          _
      $region12: #{tpu_custom_call.1} parent=5 // pred_fallthru
        _
      %p389 = scmp.lt.s32.totalorder %s23, 2
      // Predicated region
      $region53: #{tpu_custom_call.1} parent=5 // pred_check
        %p390 = pneg %p389
      $region54: #{tpu_custom_call.1} parent=5 // pred_check_branch
        %392 = sbr.rel (%p390) target = $region56
      $region55: #{tpu_custom_call.1} parent=5 // pred_region
        // Predicated region
        $region57: #{tpu_custom_call.1} parent=55 // pred_check
          %p393 = pneg %p43
        $region58: #{tpu_custom_call.1} parent=55 // pred_check_branch
          %395 = sbr.rel (%p393) target = $region60
        $region59: #{tpu_custom_call.1} parent=55 // pred_region
          %p396 = scmp.lt.s32.totalorder %s23, 1
          %s397 = scalar_select %p396, %s23, 1
          %s398 = smul.addr %s397, 8
          %s399 = scalar_lea.vmem %s0, %s398
        $region60: #{tpu_custom_call.1} parent=55 // pred_fallthru
          _
        // Predicated region
        $region61: #{tpu_custom_call.1} parent=55 // pred_check
          %p400 = pneg %p69
        $region62: #{tpu_custom_call.1} parent=55 // pred_check_branch
          %402 = sbr.rel (%p400) target = $region64
        $region63: #{tpu_custom_call.1} parent=55 // pred_region
          %p403 = scmp.lt.s32.totalorder %s23, 1
          %s404 = scalar_select %p403, %s23, 1
          %s405 = smul.addr %s404, 2
          %s406 = smul.addr %s405, 8
          %s407 = scalar_lea.vmem %s1, %s406
        $region64: #{tpu_custom_call.1} parent=55 // pred_fallthru
          _
      $region56: #{tpu_custom_call.1} parent=5 // pred_fallthru
        _
      %p408 = scmp.le.s32.totalorder 1, %s23
      %p409 = scmp.lt.s32.totalorder %s23, 3
      %p410 = pnand %p408, %p409
      %p411 = pneg %p410
      // Predicated region
      $region65: #{tpu_custom_call.1} parent=5 // pred_check
        _
      $region66: #{tpu_custom_call.1} parent=5 // pred_check_branch
        %413 = sbr.rel (%p410) target = $region68
      $region67: #{tpu_custom_call.1} parent=5 // pred_region
        %s414 = ssub.s32 %s23, 1
        // Predicated region
        $region69: #{tpu_custom_call.1} parent=67 // pred_check
          %p415 = pneg %p96
        $region70: #{tpu_custom_call.1} parent=67 // pred_check_branch
          %417 = sbr.rel (%p415) target = $region72
        $region71: #{tpu_custom_call.1} parent=67 // pred_region
          %419 = dma.done [#allocation3], 512
        $region72: #{tpu_custom_call.1} parent=67 // pred_fallthru
          _
        // Predicated region
        $region73: #{tpu_custom_call.1} parent=67 // pred_check
          %p420 = pneg %p138
        $region74: #{tpu_custom_call.1} parent=67 // pred_check_branch
          %422 = sbr.rel (%p420) target = $region76
        $region75: #{tpu_custom_call.1} parent=67 // pred_region
          %424 = dma.done [#allocation6], 512
        $region76: #{tpu_custom_call.1} parent=67 // pred_fallthru
          _
        // Predicated region
        $region77: #{tpu_custom_call.1} parent=67 // pred_check
          %p425 = pneg %p180
        $region78: #{tpu_custom_call.1} parent=67 // pred_check_branch
          %427 = sbr.rel (%p425) target = $region80
        $region79: #{tpu_custom_call.1} parent=67 // pred_region
          %429 = dma.done [#allocation6], 512
        $region80: #{tpu_custom_call.1} parent=67 // pred_fallthru
          _
        %p430 = scmp.lt.s32.totalorder %s28, 1
        %s431 = scalar_select %p430, %s28, 1
        %s432 = smul.addr %s431, 8
        %s433 = scalar_lea.vmem %s0, %s432
        %p434 = pneg %p49
        %p435 = pneg %p46
        %p436 = scmp.lt.s32.totalorder %s28, 1
        %s437 = scalar_select %p436, %s28, 1
        %s438 = smul.addr %s437, 2
        %s439 = smul.addr %s438, 8
        %s440 = scalar_lea.vmem %s1, %s439
        %p441 = pneg %p75
        %p442 = pneg %p72
        %p443 = pneg %p96
        %p444 = pneg %p93
        %p445 = pneg %p117
        %p446 = pneg %p114
        %p447 = pneg %p138
        %p448 = pneg %p135
        %p449 = pneg %p159
        %p450 = pneg %p156
        %p451 = pneg %p180
        %p452 = pneg %p177
        %p453 = pneg %p201
        %p454 = pneg %p198
        %p455 = pneg %p222
        %p456 = pneg %p219
        %p457 = pneg %p243
        %p458 = pneg %p240
        %p459 = pneg %p264
        %p460 = pneg %p261
        %p461 = pneg %p285
        %p462 = pneg %p282
        %p463 = pneg %p311
        %p464 = pneg %p308
        %s465 = sand.u32 %s298, 1
        %s466 = scalar_lea.sflag [#allocation4], %s465
        %s467 = sand.u32 %s298, 1
        %s468 = smul.addr %s467, 8
        %s469 = scalar_lea.vmem [#allocation8], %s468
        %p470 = scmp.lt.s32.totalorder %s28, 1
        %s471 = scalar_select %p470, %s28, 1
        %s472 = smul.addr %s471, 8
        %s473 = scalar_lea.vmem %s0, %s472
        %p474 = scmp.lt.s32.totalorder %s28, 1
        %s475 = scalar_select %p474, %s28, 1
        %s476 = smul.addr %s475, 2
        %s477 = smul.addr %s476, 8
        %s478 = scalar_lea.vmem %s1, %s477
        %v480 = vld [vmem:[%s473] sm:$0xff]
        %v481 = vld [vmem:[%s478] sm:$0xff]
        %v482 = vld [vmem:[%s478 + $0x8] sm:$0xff]
        %v483 = vld [vmem:[#allocation2] sm:$0xff]
        %v484 = vld [vmem:[#allocation2 + $0x8] sm:$0xff]
        %v485 = vld [vmem:[#allocation2 + $0x10] sm:$0xff]
        %v486 = vld [vmem:[#allocation2 + $0x18] sm:$0xff]
        %v487 = vld [vmem:[%s3] sm:$0x1]
        %v489 = vperm.slane %v487, 0
        %vm491 = vcmask 261120
        %v493 = vsel %vm491, %v480, 0
        %495 = vmatpush.msra.mxu0 0.0
        %496 = vmatpush.msra.mxu0 0.0
        %497 = vmatpush.msra.mxu0 0.0
        %498 = vmatpush.msra.mxu0 0.0
        %499 = vmatpush.msra.mxu0 0.0
        %500 = vmatpush.msra.mxu0 0.0
        %501 = vmatpush.msra.mxu0 0.0
        %502 = vmatpush.msra.mxu0 0.0
        %503 = vmatpush.msra.mxu0 0.0
        %504 = vmatpush.msra.mxu0 0.0
        %505 = vmatpush.msra.mxu0 0.0
        %506 = vmatpush.msra.mxu0 0.0
        %507 = vmatpush.msra.mxu0 %v486
        %508 = vmatpush.msra.mxu0 %v485
        %509 = vmatpush.msra.mxu0 %v484
        %510 = vmatpush.msra.mxu0 %v483
        %511 = vmatmul.f32.gmra.mxu0 %v493
        %v512 = vpop.f32.mrf.mxu0
        %v513 = vadd.f32 %v489, %v512
        %514 = vdwg.mxu0
        %v515 = vld [vmem:[#allocation5] sm:$0xff]
        %v516 = vld [vmem:[#allocation5 + $0x8] sm:$0xff]
        %v517 = vld [vmem:[#allocation5 + $0x10] sm:$0xff]
        %v518 = vld [vmem:[#allocation5 + $0x18] sm:$0xff]
        %v519 = vld [vmem:[%s5] sm:$0x1]
        %v521 = vperm.slane %v519, 0
        %v524 = vsel %vm491, %v481, 0
        %v527 = vsel %vm491, %v482, 0
        %529 = vmatpush.msra.mxu0 0.0
        %530 = vmatpush.msra.mxu0 0.0
        %531 = vmatpush.msra.mxu0 0.0
        %532 = vmatpush.msra.mxu0 0.0
        %533 = vmatpush.msra.mxu0 0.0
        %534 = vmatpush.msra.mxu0 0.0
        %535 = vmatpush.msra.mxu0 0.0
        %536 = vmatpush.msra.mxu0 0.0
        %537 = vmatpush.msra.mxu0 0.0
        %538 = vmatpush.msra.mxu0 0.0
        %539 = vmatpush.msra.mxu0 0.0
        %540 = vmatpush.msra.mxu0 0.0
        %541 = vmatpush.msra.mxu0 %v518
        %542 = vmatpush.msra.mxu0 %v517
        %543 = vmatpush.msra.mxu0 %v516
        %544 = vmatpush.msra.mxu0 %v515
        %545 = vmatmul.f32.gmra.mxu0 %v524
        %v546 = vpop.f32.mrf.mxu0
        %v547 = vadd.f32 %v521, %v546
        %548 = vmatmul.f32.gmra.mxu0 %v527
        %v549 = vpop.f32.mrf.mxu0
        %v550 = vadd.f32 %v521, %v549
        %551 = vdwg.mxu0
        %v552 = vmul.f32 %v513, 0.35355338
        %v553 = vld [vmem:[%s8] sm:$0xff]
        %v554 = vld [vmem:[%s9] sm:$0xff]
        %v555 = vld [vmem:[%s10] sm:$0xff]
        %v556 = vld [vmem:[%s10 + $0x8] sm:$0xff]
        %v557 = vld [vmem:[%s11] sm:$0xff]
        %v558 = vld [vmem:[%s11 + $0x8] sm:$0xff]
        %v559 = vld [vmem:[#allocation7] sm:$0xff]
        %v560 = vld [vmem:[#allocation7 + $0x8] sm:$0xff]
        %v561 = vld [vmem:[#allocation7 + $0x10] sm:$0xff]
        %v562 = vld [vmem:[#allocation7 + $0x18] sm:$0xff]
        %v563 = vmul.f32 %v552, %v553
        %565 = vrot.lane.b32.xlu0 %v554, 4
        %v566 = vpop.permute.xlu0 %565
        %v568 = vmul.f32 %v552, %v566
        %570 = vrot.lane.b32.xlu0 %v568, 124
        %v571 = vpop.permute.xlu0 %570
        %v573 = vsub.f32 %v563, %v571
        %v574 = vmul.f32 %v552, %v554
        %576 = vrot.lane.b32.xlu0 %v553, 4
        %v577 = vpop.permute.xlu0 %576
        %v579 = vmul.f32 %v552, %v577
        %581 = vrot.lane.b32.xlu0 %v579, 124
        %v582 = vpop.permute.xlu0 %581
        %v584 = vadd.f32 %v574, %v582
        %v585 = vmul.f32 %v547, %v555
        %v586 = vmul.f32 %v550, %v556
        %589 = vrot.lane.b32.xlu0 %v557, 4
        %v590 = vpop.permute.xlu0 %589
        %591 = vrot.lane.b32.xlu0 %v558, 4
        %v592 = vpop.permute.xlu0 %591
        %v595 = vmul.f32 %v547, %v590
        %v596 = vmul.f32 %v550, %v592
        %599 = vrot.lane.b32.xlu0 %v595, 124
        %v600 = vpop.permute.xlu0 %599
        %601 = vrot.lane.b32.xlu0 %v596, 124
        %v602 = vpop.permute.xlu0 %601
        %v605 = vsub.f32 %v585, %v600
        %v606 = vsub.f32 %v586, %v602
        %v607 = vmul.f32 %v547, %v557
        %v608 = vmul.f32 %v550, %v558
        %611 = vrot.lane.b32.xlu0 %v555, 4
        %v612 = vpop.permute.xlu0 %611
        %613 = vrot.lane.b32.xlu0 %v556, 4
        %v614 = vpop.permute.xlu0 %613
        %v617 = vmul.f32 %v547, %v612
        %v618 = vmul.f32 %v550, %v614
        %621 = vrot.lane.b32.xlu0 %v617, 124
        %v622 = vpop.permute.xlu0 %621
        %623 = vrot.lane.b32.xlu0 %v618, 124
        %v624 = vpop.permute.xlu0 %623
        %v627 = vadd.f32 %v607, %v622
        %v628 = vadd.f32 %v608, %v624
        %v629 = vpack.c.bf16 %v573, %v573
        %v630 = vpack.c.bf16 %v606, %v605
        %v631 = vpack.c.bf16 %v584, %v584
        %v632 = vpack.c.bf16 %v628, %v627
        %vm633 = vcmask 31744
        %v635 = vsel %vm633, %v631, 0
        %v638 = vsel %vm633, %v632, 0
        %640 = vmatpush.bf16.xpose.msra.mxu0 0
        %641 = vmatpush.bf16.xpose.msra.mxu0 0
        %642 = vmatpush.bf16.xpose.msra.mxu0 0
        %643 = vmatpush.bf16.xpose.msra.mxu0 0
        %644 = vmatpush.bf16.xpose.msra.mxu0 0
        %645 = vmatpush.bf16.xpose.msra.mxu0 0
        %646 = vmatpush.bf16.xpose.msra.mxu0 0
        %647 = vmatpush.bf16.xpose.msra.mxu0 %v638
        %648 = vmatmul.bf16.gmra.mxu0 %v635
        %v649 = vpop.f32.mrf.mxu0
        %v650 = vadd.f32 0.0, %v649
        %v651 = vpop.f32.mrf.mxu0
        %652 = vdwg.mxu0
        %v654 = vsel %vm633, %v629, 0
        %v657 = vsel %vm633, %v630, 0
        %659 = vmatpush.bf16.xpose.msra.mxu0 0
        %660 = vmatpush.bf16.xpose.msra.mxu0 0
        %661 = vmatpush.bf16.xpose.msra.mxu0 0
        %662 = vmatpush.bf16.xpose.msra.mxu0 0
        %663 = vmatpush.bf16.xpose.msra.mxu0 0
        %664 = vmatpush.bf16.xpose.msra.mxu0 0
        %665 = vmatpush.bf16.xpose.msra.mxu0 0
        %666 = vmatpush.bf16.xpose.msra.mxu0 %v657
        %667 = vmatmul.bf16.gmra.mxu0 %v654
        %v668 = vpop.f32.mrf.mxu0
        %v669 = vadd.f32 %v650, %v668
        %v670 = vpop.f32.mrf.mxu0
        %671 = vdwg.mxu0
        %vm672 = vcmask 130048
        %v673 = vsel %vm672, %v669, -inf
        %674 = vmax.xlane.f32.xlu0 %v673
        %v675 = vpop.xlane.xlu0 %674
        %v676 = vsub.f32 %v669, %v675
        %v677 = vmul.f32 %v676, 1.442695
        %v678 = vpow.pop %v677
        %v679 = vsel %vm672, %v678, 0.0
        %680 = vadd.xlane.f32.xlu0 %v679
        %v681 = vpop.xlane.xlu0 %680
        %v682 = vpack.c.bf16 %v550, %v547
        %v683 = vpack.c.bf16 %v678, %v678
        %685 = vrot.lane.b32.xlu0 %v682, 96
        %v686 = vpop.permute.xlu0 %685
        %v689 = vsel %vm672, %v683, 0
        %691 = vmatpush.bf16.msra.mxu0 0
        %692 = vmatpush.bf16.msra.mxu0 0
        %693 = vmatpush.bf16.msra.mxu0 0
        %694 = vmatpush.bf16.msra.mxu0 0
        %695 = vmatpush.bf16.msra.mxu0 0
        %696 = vmatpush.bf16.msra.mxu0 0
        %697 = vmatpush.bf16.msra.mxu0 0
        %698 = vmatpush.bf16.msra.mxu0 %v686
        %699 = vmatmul.bf16.gmra.mxu0 %v689
        %v700 = vpop.f32.mrf.mxu0
        %v701 = vadd.f32 0.0, %v700
        %v702 = vpop.f32.mrf.mxu0
        %703 = vdwg.mxu0
        %v704 = vrcp.pop %v681
        %v705 = vmul.f32 %v701, %v704
        %v706 = vpack.c.bf16 %v705, %v705
        %v707 = vunpack.c.l.bf16 %v706
        %708 = vrot.lane.b32.xlu0 %v553, 8
        %v709 = vpop.permute.xlu0 %708
        %v711 = vmul.f32 %v552, %v709
        %712 = vrot.lane.b32.xlu0 %v554, 12
        %v713 = vpop.permute.xlu0 %712
        %v715 = vmul.f32 %v552, %v713
        %717 = vrot.lane.b32.xlu0 %v715, 124
        %v718 = vpop.permute.xlu0 %717
        %v720 = vsub.f32 %v711, %v718
        %721 = vrot.lane.b32.xlu0 %v554, 8
        %v722 = vpop.permute.xlu0 %721
        %v724 = vmul.f32 %v552, %v722
        %725 = vrot.lane.b32.xlu0 %v553, 12
        %v726 = vpop.permute.xlu0 %725
        %v728 = vmul.f32 %v552, %v726
        %730 = vrot.lane.b32.xlu0 %v728, 124
        %v731 = vpop.permute.xlu0 %730
        %v733 = vadd.f32 %v724, %v731
        %734 = vrot.lane.b32.xlu0 %v555, 8
        %v735 = vpop.permute.xlu0 %734
        %736 = vrot.lane.b32.xlu0 %v556, 8
        %v737 = vpop.permute.xlu0 %736
        %v740 = vmul.f32 %v547, %v735
        %v741 = vmul.f32 %v550, %v737
        %742 = vrot.lane.b32.xlu0 %v557, 12
        %v743 = vpop.permute.xlu0 %742
        %744 = vrot.lane.b32.xlu0 %v558, 12
        %v745 = vpop.permute.xlu0 %744
        %v748 = vmul.f32 %v547, %v743
        %v749 = vmul.f32 %v550, %v745
        %752 = vrot.lane.b32.xlu0 %v748, 124
        %v753 = vpop.permute.xlu0 %752
        %754 = vrot.lane.b32.xlu0 %v749, 124
        %v755 = vpop.permute.xlu0 %754
        %v758 = vsub.f32 %v740, %v753
        %v759 = vsub.f32 %v741, %v755
        %760 = vrot.lane.b32.xlu0 %v557, 8
        %v761 = vpop.permute.xlu0 %760
        %762 = vrot.lane.b32.xlu0 %v558, 8
        %v763 = vpop.permute.xlu0 %762
        %v766 = vmul.f32 %v547, %v761
        %v767 = vmul.f32 %v550, %v763
        %768 = vrot.lane.b32.xlu0 %v555, 12
        %v769 = vpop.permute.xlu0 %768
        %770 = vrot.lane.b32.xlu0 %v556, 12
        %v771 = vpop.permute.xlu0 %770
        %v774 = vmul.f32 %v547, %v769
        %v775 = vmul.f32 %v550, %v771
        %778 = vrot.lane.b32.xlu0 %v774, 124
        %v779 = vpop.permute.xlu0 %778
        %780 = vrot.lane.b32.xlu0 %v775, 124
        %v781 = vpop.permute.xlu0 %780
        %v784 = vadd.f32 %v766, %v779
        %v785 = vadd.f32 %v767, %v781
        %v786 = vpack.c.bf16 %v720, %v720
        %v787 = vpack.c.bf16 %v759, %v758
        %v788 = vpack.c.bf16 %v733, %v733
        %v789 = vpack.c.bf16 %v785, %v784
        %791 = vrot.lane.b32.xlu0 %v788, 120
        %v792 = vpop.permute.xlu0 %791
        %794 = vrot.lane.b32.xlu0 %v789, 120
        %v795 = vpop.permute.xlu0 %794
        %v797 = vsel %vm633, %v792, 0
        %v800 = vsel %vm633, %v795, 0
        %802 = vmatpush.bf16.xpose.msra.mxu0 0
        %803 = vmatpush.bf16.xpose.msra.mxu0 0
        %804 = vmatpush.bf16.xpose.msra.mxu0 0
        %805 = vmatpush.bf16.xpose.msra.mxu0 0
        %806 = vmatpush.bf16.xpose.msra.mxu0 0
        %807 = vmatpush.bf16.xpose.msra.mxu0 0
        %808 = vmatpush.bf16.xpose.msra.mxu0 0
        %809 = vmatpush.bf16.xpose.msra.mxu0 %v800
        %810 = vmatmul.bf16.gmra.mxu0 %v797
        %v811 = vpop.f32.mrf.mxu0
        %v812 = vadd.f32 0.0, %v811
        %v813 = vpop.f32.mrf.mxu0
        %814 = vdwg.mxu0
        %816 = vrot.lane.b32.xlu0 %v786, 120
        %v817 = vpop.permute.xlu0 %816
        %819 = vrot.lane.b32.xlu0 %v787, 120
        %v820 = vpop.permute.xlu0 %819
        %v822 = vsel %vm633, %v817, 0
        %v825 = vsel %vm633, %v820, 0
        %827 = vmatpush.bf16.xpose.msra.mxu0 0
        %828 = vmatpush.bf16.xpose.msra.mxu0 0
        %829 = vmatpush.bf16.xpose.msra.mxu0 0
        %830 = vmatpush.bf16.xpose.msra.mxu0 0
        %831 = vmatpush.bf16.xpose.msra.mxu0 0
        %832 = vmatpush.bf16.xpose.msra.mxu0 0
        %833 = vmatpush.bf16.xpose.msra.mxu0 0
        %834 = vmatpush.bf16.xpose.msra.mxu0 %v825
        %835 = vmatmul.bf16.gmra.mxu0 %v822
        %v836 = vpop.f32.mrf.mxu0
        %v837 = vadd.f32 %v812, %v836
        %v838 = vpop.f32.mrf.mxu0
        %839 = vdwg.mxu0
        %v840 = vsel %vm672, %v837, -inf
        %841 = vmax.xlane.f32.xlu0 %v840
        %v842 = vpop.xlane.xlu0 %841
        %v843 = vsub.f32 %v837, %v842
        %v844 = vmul.f32 %v843, 1.442695
        %v845 = vpow.pop %v844
        %v846 = vsel %vm672, %v845, 0.0
        %847 = vadd.xlane.f32.xlu0 %v846
        %v848 = vpop.xlane.xlu0 %847
        %v849 = vpack.c.bf16 %v845, %v845
        %850 = vrot.lane.b32.xlu0 %v682, 88
        %v851 = vpop.permute.xlu0 %850
        %v854 = vsel %vm672, %v849, 0
        %856 = vmatpush.bf16.msra.mxu0 0
        %857 = vmatpush.bf16.msra.mxu0 0
        %858 = vmatpush.bf16.msra.mxu0 0
        %859 = vmatpush.bf16.msra.mxu0 0
        %860 = vmatpush.bf16.msra.mxu0 0
        %861 = vmatpush.bf16.msra.mxu0 0
        %862 = vmatpush.bf16.msra.mxu0 0
        %863 = vmatpush.bf16.msra.mxu0 %v851
        %864 = vmatmul.bf16.gmra.mxu0 %v854
        %v865 = vpop.f32.mrf.mxu0
        %v866 = vadd.f32 0.0, %v865
        %v867 = vpop.f32.mrf.mxu0
        %868 = vdwg.mxu0
        %v869 = vrcp.pop %v848
        %v870 = vmul.f32 %v866, %v869
        %v871 = vpack.c.bf16 %v870, %v870
        %v872 = vunpack.c.l.bf16 %v871
        %vm873 = vcmask 64512
        %v875 = vsel %vm873, %v872, 0
        %877 = vmatpush.msra.mxu0 0.0
        %878 = vmatpush.msra.mxu0 0.0
        %879 = vmatpush.msra.mxu0 0.0
        %880 = vmatpush.msra.mxu0 0.0
        %881 = vmatpush.msra.mxu0 0.0
        %882 = vmatpush.msra.mxu0 0.0
        %883 = vmatpush.msra.mxu0 0.0
        %884 = vmatpush.msra.mxu0 0.0
        %885 = vmatpush.msra.mxu0 0.0
        %886 = vmatpush.msra.mxu0 0.0
        %887 = vmatpush.msra.mxu0 0.0
        %888 = vmatpush.msra.mxu0 0.0
        %889 = vmatpush.msra.mxu0 0.0
        %890 = vmatpush.msra.mxu0 0.0
        %891 = vmatpush.msra.mxu0 0.0
        %892 = vmatpush.msra.mxu0 %v560
        %893 = vmatmul.f32.gmra.mxu0 %v875
        %v894 = vpop.f32.mrf.mxu0
        %v895 = vadd.f32 0.0, %v894
        %896 = vdwg.mxu0
        %v898 = vsel %vm873, %v707, 0
        %900 = vmatpush.msra.mxu0 0.0
        %901 = vmatpush.msra.mxu0 0.0
        %902 = vmatpush.msra.mxu0 0.0
        %903 = vmatpush.msra.mxu0 0.0
        %904 = vmatpush.msra.mxu0 0.0
        %905 = vmatpush.msra.mxu0 0.0
        %906 = vmatpush.msra.mxu0 0.0
        %907 = vmatpush.msra.mxu0 0.0
        %908 = vmatpush.msra.mxu0 0.0
        %909 = vmatpush.msra.mxu0 0.0
        %910 = vmatpush.msra.mxu0 0.0
        %911 = vmatpush.msra.mxu0 0.0
        %912 = vmatpush.msra.mxu0 0.0
        %913 = vmatpush.msra.mxu0 0.0
        %914 = vmatpush.msra.mxu0 0.0
        %915 = vmatpush.msra.mxu0 %v559
        %916 = vmatmul.f32.gmra.mxu0 %v898
        %v917 = vpop.f32.mrf.mxu0
        %v918 = vadd.f32 %v895, %v917
        %919 = vdwg.mxu0
        %920 = vrot.lane.b32.xlu0 %v553, 16
        %v921 = vpop.permute.xlu0 %920
        %v923 = vmul.f32 %v552, %v921
        %924 = vrot.lane.b32.xlu0 %v554, 20
        %v925 = vpop.permute.xlu0 %924
        %v927 = vmul.f32 %v552, %v925
        %929 = vrot.lane.b32.xlu0 %v927, 124
        %v930 = vpop.permute.xlu0 %929
        %v932 = vsub.f32 %v923, %v930
        %933 = vrot.lane.b32.xlu0 %v554, 16
        %v934 = vpop.permute.xlu0 %933
        %v936 = vmul.f32 %v552, %v934
        %937 = vrot.lane.b32.xlu0 %v553, 20
        %v938 = vpop.permute.xlu0 %937
        %v940 = vmul.f32 %v552, %v938
        %942 = vrot.lane.b32.xlu0 %v940, 124
        %v943 = vpop.permute.xlu0 %942
        %v945 = vadd.f32 %v936, %v943
        %946 = vrot.lane.b32.xlu0 %v555, 16
        %v947 = vpop.permute.xlu0 %946
        %948 = vrot.lane.b32.xlu0 %v556, 16
        %v949 = vpop.permute.xlu0 %948
        %v952 = vmul.f32 %v547, %v947
        %v953 = vmul.f32 %v550, %v949
        %954 = vrot.lane.b32.xlu0 %v557, 20
        %v955 = vpop.permute.xlu0 %954
        %956 = vrot.lane.b32.xlu0 %v558, 20
        %v957 = vpop.permute.xlu0 %956
        %v960 = vmul.f32 %v547, %v955
        %v961 = vmul.f32 %v550, %v957
        %964 = vrot.lane.b32.xlu0 %v960, 124
        %v965 = vpop.permute.xlu0 %964
        %966 = vrot.lane.b32.xlu0 %v961, 124
        %v967 = vpop.permute.xlu0 %966
        %v970 = vsub.f32 %v952, %v965
        %v971 = vsub.f32 %v953, %v967
        %972 = vrot.lane.b32.xlu0 %v557, 16
        %v973 = vpop.permute.xlu0 %972
        %974 = vrot.lane.b32.xlu0 %v558, 16
        %v975 = vpop.permute.xlu0 %974
        %v978 = vmul.f32 %v547, %v973
        %v979 = vmul.f32 %v550, %v975
        %980 = vrot.lane.b32.xlu0 %v555, 20
        %v981 = vpop.permute.xlu0 %980
        %982 = vrot.lane.b32.xlu0 %v556, 20
        %v983 = vpop.permute.xlu0 %982
        %v986 = vmul.f32 %v547, %v981
        %v987 = vmul.f32 %v550, %v983
        %990 = vrot.lane.b32.xlu0 %v986, 124
        %v991 = vpop.permute.xlu0 %990
        %992 = vrot.lane.b32.xlu0 %v987, 124
        %v993 = vpop.permute.xlu0 %992
        %v996 = vadd.f32 %v978, %v991
        %v997 = vadd.f32 %v979, %v993
        %v998 = vpack.c.bf16 %v932, %v932
        %v999 = vpack.c.bf16 %v971, %v970
        %v1000 = vpack.c.bf16 %v945, %v945
        %v1001 = vpack.c.bf16 %v997, %v996
        %1003 = vrot.lane.b32.xlu0 %v1000, 112
        %v1004 = vpop.permute.xlu0 %1003
        %1006 = vrot.lane.b32.xlu0 %v1001, 112
        %v1007 = vpop.permute.xlu0 %1006
        %v1009 = vsel %vm633, %v1004, 0
        %v1012 = vsel %vm633, %v1007, 0
        %1014 = vmatpush.bf16.xpose.msra.mxu0 0
        %1015 = vmatpush.bf16.xpose.msra.mxu0 0
        %1016 = vmatpush.bf16.xpose.msra.mxu0 0
        %1017 = vmatpush.bf16.xpose.msra.mxu0 0
        %1018 = vmatpush.bf16.xpose.msra.mxu0 0
        %1019 = vmatpush.bf16.xpose.msra.mxu0 0
        %1020 = vmatpush.bf16.xpose.msra.mxu0 0
        %1021 = vmatpush.bf16.xpose.msra.mxu0 %v1012
        %1022 = vmatmul.bf16.gmra.mxu0 %v1009
        %v1023 = vpop.f32.mrf.mxu0
        %v1024 = vadd.f32 0.0, %v1023
        %v1025 = vpop.f32.mrf.mxu0
        %1026 = vdwg.mxu0
        %1028 = vrot.lane.b32.xlu0 %v998, 112
        %v1029 = vpop.permute.xlu0 %1028
        %1031 = vrot.lane.b32.xlu0 %v999, 112
        %v1032 = vpop.permute.xlu0 %1031
        %v1034 = vsel %vm633, %v1029, 0
        %v1037 = vsel %vm633, %v1032, 0
        %1039 = vmatpush.bf16.xpose.msra.mxu0 0
        %1040 = vmatpush.bf16.xpose.msra.mxu0 0
        %1041 = vmatpush.bf16.xpose.msra.mxu0 0
        %1042 = vmatpush.bf16.xpose.msra.mxu0 0
        %1043 = vmatpush.bf16.xpose.msra.mxu0 0
        %1044 = vmatpush.bf16.xpose.msra.mxu0 0
        %1045 = vmatpush.bf16.xpose.msra.mxu0 0
        %1046 = vmatpush.bf16.xpose.msra.mxu0 %v1037
        %1047 = vmatmul.bf16.gmra.mxu0 %v1034
        %v1048 = vpop.f32.mrf.mxu0
        %v1049 = vadd.f32 %v1024, %v1048
        %v1050 = vpop.f32.mrf.mxu0
        %1051 = vdwg.mxu0
        %v1052 = vsel %vm672, %v1049, -inf
        %1053 = vmax.xlane.f32.xlu0 %v1052
        %v1054 = vpop.xlane.xlu0 %1053
        %v1055 = vsub.f32 %v1049, %v1054
        %v1056 = vmul.f32 %v1055, 1.442695
        %v1057 = vpow.pop %v1056
        %v1058 = vsel %vm672, %v1057, 0.0
        %1059 = vadd.xlane.f32.xlu0 %v1058
        %v1060 = vpop.xlane.xlu0 %1059
        %v1061 = vpack.c.bf16 %v1057, %v1057
        %1062 = vrot.lane.b32.xlu0 %v682, 80
        %v1063 = vpop.permute.xlu0 %1062
        %v1066 = vsel %vm672, %v1061, 0
        %1068 = vmatpush.bf16.msra.mxu0 0
        %1069 = vmatpush.bf16.msra.mxu0 0
        %1070 = vmatpush.bf16.msra.mxu0 0
        %1071 = vmatpush.bf16.msra.mxu0 0
        %1072 = vmatpush.bf16.msra.mxu0 0
        %1073 = vmatpush.bf16.msra.mxu0 0
        %1074 = vmatpush.bf16.msra.mxu0 0
        %1075 = vmatpush.bf16.msra.mxu0 %v1063
        %1076 = vmatmul.bf16.gmra.mxu0 %v1066
        %v1077 = vpop.f32.mrf.mxu0
        %v1078 = vadd.f32 0.0, %v1077
        %v1079 = vpop.f32.mrf.mxu0
        %1080 = vdwg.mxu0
        %v1081 = vrcp.pop %v1060
        %v1082 = vmul.f32 %v1078, %v1081
        %v1083 = vpack.c.bf16 %v1082, %v1082
        %v1084 = vunpack.c.l.bf16 %v1083
        %v1086 = vsel %vm873, %v1084, 0
        %1088 = vmatpush.msra.mxu0 0.0
        %1089 = vmatpush.msra.mxu0 0.0
        %1090 = vmatpush.msra.mxu0 0.0
        %1091 = vmatpush.msra.mxu0 0.0
        %1092 = vmatpush.msra.mxu0 0.0
        %1093 = vmatpush.msra.mxu0 0.0
        %1094 = vmatpush.msra.mxu0 0.0
        %1095 = vmatpush.msra.mxu0 0.0
        %1096 = vmatpush.msra.mxu0 0.0
        %1097 = vmatpush.msra.mxu0 0.0
        %1098 = vmatpush.msra.mxu0 0.0
        %1099 = vmatpush.msra.mxu0 0.0
        %1100 = vmatpush.msra.mxu0 0.0
        %1101 = vmatpush.msra.mxu0 0.0
        %1102 = vmatpush.msra.mxu0 0.0
        %1103 = vmatpush.msra.mxu0 %v561
        %1104 = vmatmul.f32.gmra.mxu0 %v1086
        %v1105 = vpop.f32.mrf.mxu0
        %v1106 = vadd.f32 0.0, %v1105
        %1107 = vdwg.mxu0
        %v1108 = vadd.f32 %v918, %v1106
        %1109 = vrot.lane.b32.xlu0 %v553, 24
        %v1110 = vpop.permute.xlu0 %1109
        %v1112 = vmul.f32 %v552, %v1110
        %1113 = vrot.lane.b32.xlu0 %v554, 28
        %v1114 = vpop.permute.xlu0 %1113
        %v1116 = vmul.f32 %v552, %v1114
        %1118 = vrot.lane.b32.xlu0 %v1116, 124
        %v1119 = vpop.permute.xlu0 %1118
        %v1121 = vsub.f32 %v1112, %v1119
        %1122 = vrot.lane.b32.xlu0 %v554, 24
        %v1123 = vpop.permute.xlu0 %1122
        %v1125 = vmul.f32 %v552, %v1123
        %1126 = vrot.lane.b32.xlu0 %v553, 28
        %v1127 = vpop.permute.xlu0 %1126
        %v1129 = vmul.f32 %v552, %v1127
        %1131 = vrot.lane.b32.xlu0 %v1129, 124
        %v1132 = vpop.permute.xlu0 %1131
        %v1134 = vadd.f32 %v1125, %v1132
        %1135 = vrot.lane.b32.xlu0 %v555, 24
        %v1136 = vpop.permute.xlu0 %1135
        %1137 = vrot.lane.b32.xlu0 %v556, 24
        %v1138 = vpop.permute.xlu0 %1137
        %v1141 = vmul.f32 %v547, %v1136
        %v1142 = vmul.f32 %v550, %v1138
        %1143 = vrot.lane.b32.xlu0 %v557, 28
        %v1144 = vpop.permute.xlu0 %1143
        %1145 = vrot.lane.b32.xlu0 %v558, 28
        %v1146 = vpop.permute.xlu0 %1145
        %v1149 = vmul.f32 %v547, %v1144
        %v1150 = vmul.f32 %v550, %v1146
        %1153 = vrot.lane.b32.xlu0 %v1149, 124
        %v1154 = vpop.permute.xlu0 %1153
        %1155 = vrot.lane.b32.xlu0 %v1150, 124
        %v1156 = vpop.permute.xlu0 %1155
        %v1159 = vsub.f32 %v1141, %v1154
        %v1160 = vsub.f32 %v1142, %v1156
        %1161 = vrot.lane.b32.xlu0 %v557, 24
        %v1162 = vpop.permute.xlu0 %1161
        %1163 = vrot.lane.b32.xlu0 %v558, 24
        %v1164 = vpop.permute.xlu0 %1163
        %v1167 = vmul.f32 %v547, %v1162
        %v1168 = vmul.f32 %v550, %v1164
        %1169 = vrot.lane.b32.xlu0 %v555, 28
        %v1170 = vpop.permute.xlu0 %1169
        %1171 = vrot.lane.b32.xlu0 %v556, 28
        %v1172 = vpop.permute.xlu0 %1171
        %v1175 = vmul.f32 %v547, %v1170
        %v1176 = vmul.f32 %v550, %v1172
        %1179 = vrot.lane.b32.xlu0 %v1175, 124
        %v1180 = vpop.permute.xlu0 %1179
        %1181 = vrot.lane.b32.xlu0 %v1176, 124
        %v1182 = vpop.permute.xlu0 %1181
        %v1185 = vadd.f32 %v1167, %v1180
        %v1186 = vadd.f32 %v1168, %v1182
        %v1187 = vpack.c.bf16 %v1121, %v1121
        %v1188 = vpack.c.bf16 %v1160, %v1159
        %v1189 = vpack.c.bf16 %v1134, %v1134
        %v1190 = vpack.c.bf16 %v1186, %v1185
        %1192 = vrot.lane.b32.xlu0 %v1189, 104
        %v1193 = vpop.permute.xlu0 %1192
        %1195 = vrot.lane.b32.xlu0 %v1190, 104
        %v1196 = vpop.permute.xlu0 %1195
        %v1198 = vsel %vm633, %v1193, 0
        %v1201 = vsel %vm633, %v1196, 0
        %1203 = vmatpush.bf16.xpose.msra.mxu0 0
        %1204 = vmatpush.bf16.xpose.msra.mxu0 0
        %1205 = vmatpush.bf16.xpose.msra.mxu0 0
        %1206 = vmatpush.bf16.xpose.msra.mxu0 0
        %1207 = vmatpush.bf16.xpose.msra.mxu0 0
        %1208 = vmatpush.bf16.xpose.msra.mxu0 0
        %1209 = vmatpush.bf16.xpose.msra.mxu0 0
        %1210 = vmatpush.bf16.xpose.msra.mxu0 %v1201
        %1211 = vmatmul.bf16.gmra.mxu0 %v1198
        %v1212 = vpop.f32.mrf.mxu0
        %v1213 = vadd.f32 0.0, %v1212
        %v1214 = vpop.f32.mrf.mxu0
        %1215 = vdwg.mxu0
        %1217 = vrot.lane.b32.xlu0 %v1187, 104
        %v1218 = vpop.permute.xlu0 %1217
        %1220 = vrot.lane.b32.xlu0 %v1188, 104
        %v1221 = vpop.permute.xlu0 %1220
        %v1223 = vsel %vm633, %v1218, 0
        %v1226 = vsel %vm633, %v1221, 0
        %1228 = vmatpush.bf16.xpose.msra.mxu0 0
        %1229 = vmatpush.bf16.xpose.msra.mxu0 0
        %1230 = vmatpush.bf16.xpose.msra.mxu0 0
        %1231 = vmatpush.bf16.xpose.msra.mxu0 0
        %1232 = vmatpush.bf16.xpose.msra.mxu0 0
        %1233 = vmatpush.bf16.xpose.msra.mxu0 0
        %1234 = vmatpush.bf16.xpose.msra.mxu0 0
        %1235 = vmatpush.bf16.xpose.msra.mxu0 %v1226
        %1236 = vmatmul.bf16.gmra.mxu0 %v1223
        %v1237 = vpop.f32.mrf.mxu0
        %v1238 = vadd.f32 %v1213, %v1237
        %v1239 = vpop.f32.mrf.mxu0
        %1240 = vdwg.mxu0
        %v1241 = vsel %vm672, %v1238, -inf
        %1242 = vmax.xlane.f32.xlu0 %v1241
        %v1243 = vpop.xlane.xlu0 %1242
        %v1244 = vsub.f32 %v1238, %v1243
        %v1245 = vmul.f32 %v1244, 1.442695
        %v1246 = vpow.pop %v1245
        %v1247 = vsel %vm672, %v1246, 0.0
        %1248 = vadd.xlane.f32.xlu0 %v1247
        %v1249 = vpop.xlane.xlu0 %1248
        %v1250 = vpack.c.bf16 %v1246, %v1246
        %1251 = vrot.lane.b32.xlu0 %v682, 72
        %v1252 = vpop.permute.xlu0 %1251
        %v1255 = vsel %vm672, %v1250, 0
        %1257 = vmatpush.bf16.msra.mxu0 0
        %1258 = vmatpush.bf16.msra.mxu0 0
        %1259 = vmatpush.bf16.msra.mxu0 0
        %1260 = vmatpush.bf16.msra.mxu0 0
        %1261 = vmatpush.bf16.msra.mxu0 0
        %1262 = vmatpush.bf16.msra.mxu0 0
        %1263 = vmatpush.bf16.msra.mxu0 0
        %1264 = vmatpush.bf16.msra.mxu0 %v1252
        %1265 = vmatmul.bf16.gmra.mxu0 %v1255
        %v1266 = vpop.f32.mrf.mxu0
        %v1267 = vadd.f32 0.0, %v1266
        %v1268 = vpop.f32.mrf.mxu0
        %1269 = vdwg.mxu0
        %v1270 = vrcp.pop %v1249
        %v1271 = vmul.f32 %v1267, %v1270
        %v1272 = vpack.c.bf16 %v1271, %v1271
        %v1273 = vunpack.c.l.bf16 %v1272
        %v1275 = vsel %vm873, %v1273, 0
        %1277 = vmatpush.msra.mxu0 0.0
        %1278 = vmatpush.msra.mxu0 0.0
        %1279 = vmatpush.msra.mxu0 0.0
        %1280 = vmatpush.msra.mxu0 0.0
        %1281 = vmatpush.msra.mxu0 0.0
        %1282 = vmatpush.msra.mxu0 0.0
        %1283 = vmatpush.msra.mxu0 0.0
        %1284 = vmatpush.msra.mxu0 0.0
        %1285 = vmatpush.msra.mxu0 0.0
        %1286 = vmatpush.msra.mxu0 0.0
        %1287 = vmatpush.msra.mxu0 0.0
        %1288 = vmatpush.msra.mxu0 0.0
        %1289 = vmatpush.msra.mxu0 0.0
        %1290 = vmatpush.msra.mxu0 0.0
        %1291 = vmatpush.msra.mxu0 0.0
        %1292 = vmatpush.msra.mxu0 %v562
        %1293 = vmatmul.f32.gmra.mxu0 %v1275
        %v1294 = vpop.f32.mrf.mxu0
        %v1295 = vadd.f32 0.0, %v1294
        %1296 = vdwg.mxu0
        %v1297 = vadd.f32 %v1108, %v1295
        %v1298 = vld [vmem:[%s7] sm:$0x1]
        %v1300 = vperm.slane %v1298, 0
        %v1302 = vadd.f32 %v1297, %v1300
        %1303 = vst.msk [vmem:[%s469] sm:$0xff] %vm491, %v1302
        %s1304 = sand.u32 %s298, 1
        %s1305 = scalar_lea.sflag [#allocation4], %s1304
        %s1306 = sand.u32 %s298, 1
        %s1307 = smul.addr %s1306, 8
        %s1308 = scalar_lea.vmem [#allocation8], %s1307
        // Predicated region
        $region81: #{tpu_custom_call.1} parent=67 // pred_check
          %p1309 = pneg %p308
        $region82: #{tpu_custom_call.1} parent=67 // pred_check_branch
          %1311 = sbr.rel (%p1309) target = $region84
        $region83: #{tpu_custom_call.1} parent=67 // pred_region
          %1313 = vsyncadd %s1305, 0
          %s1314 = smul.addr %s28, 8
          %s1315 = scalar_lea.hbm %s12, %s1314
          %s1317 = sshll.u32 %s1308, 4
          %s1318 = int_to_ptr.vmem [resolvable:$true] %s1317
          %s1319 = sshll.u32 %s1315, 4
          %s1320 = int_to_ptr.hbm [resolvable:$true] %s1319
          %1322 = dma.vmem_to_hbm [thread:$0]  %s1318, 128, %s1320, %s1305
        $region84: #{tpu_custom_call.1} parent=67 // pred_fallthru
          _
      $region68: #{tpu_custom_call.1} parent=5 // pred_fallthru
        _
      %p1323 = scmp.le.s32.totalorder 2, %s23
      // Predicated region
      $region85: #{tpu_custom_call.1} parent=5 // pred_check
        %p1324 = pneg %p1323
      $region86: #{tpu_custom_call.1} parent=5 // pred_check_branch
        %1326 = sbr.rel (%p1324) target = $region88
      $region87: #{tpu_custom_call.1} parent=5 // pred_region
        %s1327 = ssub.s32 %s23, 2
        // Predicated region
        $region89: #{tpu_custom_call.1} parent=87 // pred_check
          %p1328 = pneg %p314
        $region90: #{tpu_custom_call.1} parent=87 // pred_check_branch
          %1330 = sbr.rel (%p1328) target = $region92
        $region91: #{tpu_custom_call.1} parent=87 // pred_region
          %s1331 = sand.u32 %s299, 1
          %s1332 = scalar_lea.sflag [#allocation4], %s1331
          %s1333 = sand.u32 %s299, 1
          %s1334 = smul.addr %s1333, 8
          %s1335 = scalar_lea.vmem [#allocation8], %s1334
          %1337 = dma.done %s1332, 128
        $region92: #{tpu_custom_call.1} parent=87 // pred_fallthru
          _
      $region88: #{tpu_custom_call.1} parent=5 // pred_fallthru
        _
    $region6: #{tpu_custom_call.1} parent=1 // loop_footer
      %s27 = sadd.s32 1, %s23
    $region7: #{tpu_custom_call.1} parent=1 // loop_footer_branch
      %22 = sbr.rel target = $region3
    $region8: #{tpu_custom_call.1} parent=1 // loop_exit
      _
    %1338 = vsyncpa [#allocation3], 1
    %s1339 = scalar_lea.sflag [#allocation3], 1
    %1340 = vsyncpa %s1339, 1
    %1341 = vsyncpa [#allocation6], 1
    %1342 = vsyncpa [#allocation4], 1
    %s1343 = scalar_lea.sflag [#allocation4], 1
    %1344 = vsyncpa %s1343, 1

</llo_original>
